<compile_context>
chip_gen: v7x
topology: tpu7x:2x2x1
jax: 0.10.0
libtpu: 0.0.40
codegen_flags: <defaults>
</compile_context>

<pallas_src>
import functools

import jax
import jax.numpy as jnp
from jax.experimental import pallas as pl
from jax.experimental.pallas import tpu as pltpu

PAD = 0


# ----------------------------- Pallas kernel ------------------------------- #
def _bidir_lstm_chunk_kernel(xf_ref, xb_ref, wbd_ref, out_ref, hN_ref, cN_ref,
                             state_ref, *, TT, H, nT):
    """One time-chunk of the fused bidirectional LSTM recurrence.

    xf_ref : (TT, Bp, 4H) forward  input gates for chunk  i         (asc. time)
    xb_ref : (TT, Bp, 4H) backward input gates for chunk  nT-1-i    (asc. time;
             walked in reverse inside the kernel — no XLA pre-reversal)
    wbd_ref: (2H, 8H) block-diagonal recurrent weights, resident in VMEM.
    out_ref: (T, Bp, 2H) lane-dense output [fwd | bwd], VMEM-resident across
             the whole grid (constant block index), flushed once at the end.
    hN/cN  : (2, Bp, H) final states, written once at the last grid step.
    state  : (2, Bp, 2H) VMEM scratch carrying [h | c] (each [fwd|bwd] fused
             along lanes) across grid steps.
    """
    i = pl.program_id(0)

    @pl.when(i == 0)
    def _():
        state_ref[...] = jnp.zeros_like(state_ref)

    wbd = wbd_ref[...]                      # load once, reuse every step
    base_f = i * TT                         # forward chunk origin (time)
    base_b = (nT - 1 - i) * TT              # backward chunk origin (time)

    def step(t, carry):
        h, c = carry                        # (Bp, 2H) each, [fwd | bwd]
        # single MXU push for both directions (block-diagonal weights)
        hw = jnp.dot(h, wbd, preferred_element_type=jnp.float32)   # (Bp, 8H)
        gates_f = xf_ref[t] + hw[:, :4 * H]
        gates_b = xb_ref[TT - 1 - t] + hw[:, 4 * H:]

        def cell(gates, c_d):
            # gate layout (i, f, o, g): one sigmoid slab (3H) + one tanh (H)
            sig = 0.5 * jnp.tanh(0.5 * gates[:, :3 * H]) + 0.5
            g_g = jnp.tanh(gates[:, 3 * H:])
            c_new = sig[:, H:2 * H] * c_d + sig[:, :H] * g_g
            h_new = sig[:, 2 * H:3 * H] * jnp.tanh(c_new)
            return h_new, c_new

        hf, cf = cell(gates_f, c[:, :H])
        hb, cb = cell(gates_b, c[:, H:])

        # lane-dense stores: fwd -> lanes [0,H), bwd -> lanes [H,2H)
        out_ref[base_f + t, :, :H] = hf
        out_ref[base_b + (TT - 1 - t), :, H:] = hb

        return (jnp.concatenate([hf, hb], axis=-1),
                jnp.concatenate([cf, cb], axis=-1))

    unroll = True if TT <= 8 else 4         # partial unroll for long chunks
    h_fin, c_fin = jax.lax.fori_loop(0, TT, step,
                                     (state_ref[0], state_ref[1]),
                                     unroll=unroll)
    state_ref[0] = h_fin
    state_ref[1] = c_fin

    @pl.when(i == nT - 1)
    def _():
        hN_ref[0] = h_fin[:, :H]
        hN_ref[1] = h_fin[:, H:]
        cN_ref[0] = c_fin[:, :H]
        cN_ref[1] = c_fin[:, H:]


def bidir_lstm_pallas(emb, w_ih, w_hh, b, time_chunk=16):
    """emb: (T,B,E); w_ih: (2,4H,E); w_hh: (2,4H,H); b: (2,4H) (= b_ih+b_hh).
    Returns outputs (T,B,2H) and (h_n, c_n) each (2,B,H)."""
    T, B, E = emb.shape
    H = w_hh.shape[2]

    # pad batch to a sublane multiple (zero rows, sliced off afterwards)
    Bp = max(8, -(-B // 8) * 8)
    emb_p = jnp.pad(emb, ((0, 0), (0, Bp - B), (0, 0))) if Bp != B else emb

    # Gate order (i, f, g, o) -> (i, f, o, g): sigmoid gates become one
    # contiguous 3H slab, tanh gate the trailing H slab.
    gate_perm = jnp.concatenate([jnp.arange(0, 2 * H),
                                 jnp.arange(3 * H, 4 * H),
                                 jnp.arange(2 * H, 3 * H)])
    w_ih_p = w_ih[:, gate_perm, :]
    w_hh_p = w_hh[:, gate_perm, :]
    b_p = b[:, gate_perm]

    # Hoisted input projection: one big XLA matmul per direction, bias folded.
    # No pre-reversal / stacking: the kernel handles the backward time order.
    xg = jnp.einsum('tbe,dge->dtbg', emb_p, w_ih_p,
                    preferred_element_type=jnp.float32) + b_p[:, None, None, :]
    xg_f, xg_b = xg[0], xg[1]                               # (T, Bp, 4H) each
    # TODO(synk): on v6e/v7x, xg (and the MXU operands) could be bf16 to halve
    # HBM traffic; kept f32 here for strict parity with the reference.

    # Block-diagonal recurrent weights: one (Bp,2H)x(2H,8H) MXU push per step.
    # TODO(synk): on v7x, split the two directions across the two TensorCores
    # (leading "parallel" grid axis / pl.core_map) instead of this fusion.
    wbd = jnp.zeros((2 * H, 8 * H), jnp.float32)
    wbd = wbd.at[:H, :4 * H].set(w_hh_p[0].T)
    wbd = wbd.at[H:, 4 * H:].set(w_hh_p[1].T)

    # Time chunk: largest divisor of T not exceeding `time_chunk`.
    TT = max(d for d in range(1, min(time_chunk, T) + 1) if T % d == 0)
    nT = T // TT

    # TODO(synk): for very long sequences the (T,Bp,2H) output (VMEM-resident
    # here) should also be time-chunked (separate fwd/bwd arrays, reversed
    # index_map for the backward one).
    kernel = functools.partial(_bidir_lstm_chunk_kernel, TT=TT, H=H, nT=nT)
    out, h_n, c_n = pl.pallas_call(
        kernel,
        out_shape=(
            jax.ShapeDtypeStruct((T, Bp, 2 * H), jnp.float32),
            jax.ShapeDtypeStruct((2, Bp, H), jnp.float32),
            jax.ShapeDtypeStruct((2, Bp, H), jnp.float32),
        ),
        grid_spec=pltpu.PrefetchScalarGridSpec(
            num_scalar_prefetch=0,
            grid=(nT,),
            in_specs=[
                pl.BlockSpec((TT, Bp, 4 * H), lambda i: (i, 0, 0)),
                pl.BlockSpec((TT, Bp, 4 * H), lambda i: (nT - 1 - i, 0, 0)),
                pl.BlockSpec((2 * H, 8 * H), lambda i: (0, 0)),
            ],
            out_specs=(
                pl.BlockSpec((T, Bp, 2 * H), lambda i: (0, 0, 0)),
                pl.BlockSpec((2, Bp, H), lambda i: (0, 0, 0)),
                pl.BlockSpec((2, Bp, H), lambda i: (0, 0, 0)),
            ),
            scratch_shapes=[pltpu.VMEM((2, Bp, 2 * H), jnp.float32)],
        ),
        compiler_params=pltpu.CompilerParams(
            dimension_semantics=("arbitrary",),
            vmem_limit_bytes=32 * 1024 * 1024),
    )(xg_f, xg_b, wbd)

    return out[:, :B], (h_n[:, :B], c_n[:, :B])


# ------------------------------- JAX glue ---------------------------------- #
def init_params(key, vocab_size, hidden_size=32, embedding_size=None):
    embedding_size = embedding_size or hidden_size
    assert hidden_size % 2 == 0
    H = hidden_size // 2                       # per-direction hidden size
    E = embedding_size
    k_emb, k1, k2, k3, k4 = jax.random.split(key, 5)

    embedding = jax.random.normal(k_emb, (vocab_size, E), jnp.float32)
    embedding = embedding.at[PAD].set(0.0)     # padding_idx=PAD

    bound = 1.0 / jnp.sqrt(H)
    u = lambda k, shp: jax.random.uniform(k, shp, jnp.float32, -bound, bound)
    w_ih = u(k1, (2, 4 * H, E))                # [fwd, bwd], PyTorch (i,f,g,o)
    w_hh = u(k2, (2, 4 * H, H))
    b_ih = u(k3, (2, 4 * H))
    b_hh = u(k4, (2, 4 * H))
    return dict(embedding=embedding, w_ih=w_ih, w_hh=w_hh, b=b_ih + b_hh)


def recurrent_encoder_forward(params, tokens, time_chunk=16):
    """tokens: (T, B) int32.  Returns State dict mirroring the PyTorch module."""
    padding_mask = (tokens == PAD)                        # inputs.eq(PAD)
    emb = jnp.take(params["embedding"], tokens, axis=0)   # (T,B,E); dropout=0
    outputs, hidden_t = bidir_lstm_pallas(
        emb, params["w_ih"], params["w_hh"], params["b"], time_chunk=time_chunk)
    context = None  # context_transform=None in defaults
    # TODO(synk): PackedSequence path and StackedRecurrent (num_bidirectional <
    # num_layers) path are not representable here; only the dense-tensor path.
    return dict(outputs=outputs, hidden=hidden_t, context=context,
                mask=padding_mask, batch_first=False)


# --------------------------- pure-JAX reference ----------------------------- #
def _ref_lstm_dir(emb, w_ih, w_hh, b, reverse):
    B = emb.shape[1]
    H = w_hh.shape[1]

    def step(carry, x):
        h, c = carry
        gates = x @ w_ih.T + h @ w_hh.T + b
        i, f, g, o = jnp.split(gates, 4, axis=-1)
        c = jax.nn.sigmoid(f) * c + jax.nn.sigmoid(i) * jnp.tanh(g)
        h = jax.nn.sigmoid(o) * jnp.tanh(c)
        return (h, c), h

    xs = emb[::-1] if reverse else emb
    (hT, cT), hs = jax.lax.scan(step, (jnp.zeros((B, H)), jnp.zeros((B, H))), xs)
    hs = hs[::-1] if reverse else hs
    return hs, hT, cT


def _ref_forward(params, tokens):
    emb = jnp.take(params["embedding"], tokens, axis=0)
    f_out, f_h, f_c = _ref_lstm_dir(emb, params["w_ih"][0], params["w_hh"][0],
                                    params["b"][0], False)
    b_out, b_h, b_c = _ref_lstm_dir(emb, params["w_ih"][1], params["w_hh"][1],
                                    params["b"][1], True)
    outputs = jnp.concatenate([f_out, b_out], axis=-1)
    return outputs, (jnp.stack([f_h, b_h]), jnp.stack([f_c, b_c]))


# ---------------------------------- main ------------------------------------ #
if __name__ == "__main__":
    vocab_size, hidden_size, T, B = 50, 32, 8, 4

    key = jax.random.PRNGKey(0)
    k_p, k_t = jax.random.split(key)
    params = init_params(k_p, vocab_size, hidden_size)

    tokens = jax.random.randint(k_t, (T, B), 1, vocab_size, dtype=jnp.int32)
    tokens = tokens.at[-2:, 0].set(PAD)   # some padding to exercise the mask

    # time_chunk=4 -> grid=(2,) so the chunked / state-carrying path is tested
    forward = jax.jit(lambda p, t: recurrent_encoder_forward(p, t, time_chunk=4))
    state = forward(params, tokens)
    jax.block_until_ready(state["outputs"])
    jax.block_until_ready(state["hidden"])

    # correctness check vs pure-JAX lax.scan reference
    ref_out, (ref_h, ref_c) = _ref_forward(params, tokens)
    assert jnp.allclose(state["outputs"], ref_out, atol=1e-4, rtol=1e-4)
    assert jnp.allclose(state["hidden"][0], ref_h, atol=1e-4, rtol=1e-4)
    assert jnp.allclose(state["hidden"][1], ref_c, atol=1e-4, rtol=1e-4)
    assert state["outputs"].shape == (T, B, hidden_size)
    assert state["mask"].shape == (T, B)
    assert state["context"] is None

    print("KERNEL_OK")
</pallas_src>

<mosaic_0001>
module attributes {stable_mosaic.version = 11 : i64} {
  func.func @_bidir_lstm_chunk_kernel(%arg0: i32, %arg1: memref<4x8x64xf32, #tpu.memory_space<vmem>>, %arg2: memref<4x8x64xf32, #tpu.memory_space<vmem>>, %arg3: memref<32x128xf32, #tpu.memory_space<vmem>>, %arg4: memref<8x8x32xf32, #tpu.memory_space<vmem>>, %arg5: memref<2x8x16xf32, #tpu.memory_space<vmem>>, %arg6: memref<2x8x16xf32, #tpu.memory_space<vmem>>, %arg7: memref<2x8x32xf32, #tpu.memory_space<vmem>>) attributes {dimension_semantics = [#tpu.dimension_semantics<arbitrary>], iteration_bounds = array<i64: 2>, scalar_prefetch = 0 : i64, scratch_operands = 1 : i64, tpu.core_type = #tpu.core_type<tc>, window_params = [{transform_indices = @transform_0, window_bounds = array<i64: 4, 8, 64>}, {transform_indices = @transform_1, window_bounds = array<i64: 4, 8, 64>}, {pipeline_mode = #tpu.pipeline_mode<synchronous>, transform_indices = @transform_2, window_bounds = array<i64: 32, 128>}, {pipeline_mode = #tpu.pipeline_mode<synchronous>, transform_indices = @transform_3, window_bounds = array<i64: 8, 8, 32>}, {pipeline_mode = #tpu.pipeline_mode<synchronous>, transform_indices = @transform_4, window_bounds = array<i64: 2, 8, 16>}, {pipeline_mode = #tpu.pipeline_mode<synchronous>, transform_indices = @transform_5, window_bounds = array<i64: 2, 8, 16>}]} {
    %c0_i32 = arith.constant 0 : i32
    %0 = arith.cmpi eq, %arg0, %c0_i32 : i32
    %1 = arith.extui %0 : i1 to i32
    %c0_i32_0 = arith.constant 0 : i32
    %2 = arith.cmpi ne, %1, %c0_i32_0 : i32
    scf.if %2 {
      %cst_85 = arith.constant 0.000000e+00 : f32
      %272 = vector.broadcast %cst_85 : f32 to vector<2x8x32xf32>
      %c0_86 = arith.constant 0 : index
      %c0_87 = arith.constant 0 : index
      %c0_88 = arith.constant 0 : index
      %273 = vector.load %arg7[%c0_86, %c0_87, %c0_88] : memref<2x8x32xf32, #tpu.memory_space<vmem>>, vector<2x8x32xf32>
      tpu.vector_store %arg7[%c0_86, %c0_87, %c0_88], %272 {strides = array<i32>} : memref<2x8x32xf32, #tpu.memory_space<vmem>>, vector<2x8x32xf32>,
    } else {
    }
    %c0 = arith.constant 0 : index
    %c0_1 = arith.constant 0 : index
    %3 = vector.load %arg3[%c0, %c0_1] : memref<32x128xf32, #tpu.memory_space<vmem>>, vector<32x128xf32>
    %c4_i32 = arith.constant 4 : i32
    %4 = arith.muli %arg0, %c4_i32 : i32
    %c1_i32 = arith.constant 1 : i32
    %5 = arith.subi %c1_i32, %arg0 : i32
    %c4_i32_2 = arith.constant 4 : i32
    %6 = arith.muli %5, %c4_i32_2 : i32
    %c0_3 = arith.constant 0 : index
    %c0_4 = arith.constant 0 : index
    %c0_5 = arith.constant 0 : index
    %7 = vector.load %arg7[%c0_3, %c0_4, %c0_5] : memref<2x8x32xf32, #tpu.memory_space<vmem>>, vector<1x8x32xf32>
    %8 = vector.shape_cast %7 : vector<1x8x32xf32> to vector<8x32xf32>
    %c1 = arith.constant 1 : index
    %c0_6 = arith.constant 0 : index
    %c0_7 = arith.constant 0 : index
    %9 = vector.load %arg7[%c1, %c0_6, %c0_7] : memref<2x8x32xf32, #tpu.memory_space<vmem>>, vector<1x8x32xf32>
    %10 = vector.shape_cast %9 : vector<1x8x32xf32> to vector<8x32xf32>
    %c0_i32_8 = arith.constant 0 : i32
    %cst = arith.constant dense<0.000000e+00> : vector<8x128xf32>
    %11 = tpu.matmul %8, %3, %cst {dimension_numbers = #tpu.dot_dimension_numbers<[1], [0], [0], [1], [0, 0, 1, 1], [], []>} : vector<8x32xf32>, vector<32x128xf32>, vector<8x128xf32> -> vector<8x128xf32>
    %12 = arith.index_cast %c0_i32_8 : i32 to index
    %c0_9 = arith.constant 0 : index
    %c0_10 = arith.constant 0 : index
    %13 = vector.load %arg1[%12, %c0_9, %c0_10] : memref<4x8x64xf32, #tpu.memory_space<vmem>>, vector<1x8x64xf32>
    %14 = vector.shape_cast %13 : vector<1x8x64xf32> to vector<8x64xf32>
    %15 = vector.extract_strided_slice %11 {offsets = [0, 0], sizes = [8, 64], strides = [1, 1]} : vector<8x128xf32> to vector<8x64xf32>
    %16 = arith.addf %14, %15 : vector<8x64xf32>
    %c3_i32 = arith.constant 3 : i32
    %17 = arith.subi %c3_i32, %c0_i32_8 : i32
    %18 = arith.index_cast %17 : i32 to index
    %c0_11 = arith.constant 0 : index
    %c0_12 = arith.constant 0 : index
    %19 = vector.load %arg2[%18, %c0_11, %c0_12] : memref<4x8x64xf32, #tpu.memory_space<vmem>>, vector<1x8x64xf32>
    %20 = vector.shape_cast %19 : vector<1x8x64xf32> to vector<8x64xf32>
    %21 = vector.extract_strided_slice %11 {offsets = [0, 64], sizes = [8, 64], strides = [1, 1]} : vector<8x128xf32> to vector<8x64xf32>
    %22 = arith.addf %20, %21 : vector<8x64xf32>
    %23 = vector.extract_strided_slice %10 {offsets = [0, 0], sizes = [8, 16], strides = [1, 1]} : vector<8x32xf32> to vector<8x16xf32>
    %24 = vector.extract_strided_slice %16 {offsets = [0, 0], sizes = [8, 48], strides = [1, 1]} : vector<8x64xf32> to vector<8x48xf32>
    %cst_13 = arith.constant 5.000000e-01 : f32
    %25 = vector.broadcast %cst_13 : f32 to vector<8x48xf32>
    %26 = arith.mulf %25, %24 : vector<8x48xf32>
    %27 = math.tanh %26 : vector<8x48xf32>
    %cst_14 = arith.constant 5.000000e-01 : f32
    %28 = vector.broadcast %cst_14 : f32 to vector<8x48xf32>
    %29 = arith.mulf %28, %27 : vector<8x48xf32>
    %cst_15 = arith.constant 5.000000e-01 : f32
    %30 = vector.broadcast %cst_15 : f32 to vector<8x48xf32>
    %31 = arith.addf %29, %30 : vector<8x48xf32>
    %32 = vector.extract_strided_slice %16 {offsets = [0, 48], sizes = [8, 16], strides = [1, 1]} : vector<8x64xf32> to vector<8x16xf32>
    %33 = math.tanh %32 : vector<8x16xf32>
    %34 = vector.extract_strided_slice %31 {offsets = [0, 16], sizes = [8, 16], strides = [1, 1]} : vector<8x48xf32> to vector<8x16xf32>
    %35 = arith.mulf %34, %23 : vector<8x16xf32>
    %36 = vector.extract_strided_slice %31 {offsets = [0, 0], sizes = [8, 16], strides = [1, 1]} : vector<8x48xf32> to vector<8x16xf32>
    %37 = arith.mulf %36, %33 : vector<8x16xf32>
    %38 = arith.addf %35, %37 : vector<8x16xf32>
    %39 = vector.extract_strided_slice %31 {offsets = [0, 32], sizes = [8, 16], strides = [1, 1]} : vector<8x48xf32> to vector<8x16xf32>
    %40 = math.tanh %38 : vector<8x16xf32>
    %41 = arith.mulf %39, %40 : vector<8x16xf32>
    %42 = vector.extract_strided_slice %10 {offsets = [0, 16], sizes = [8, 16], strides = [1, 1]} : vector<8x32xf32> to vector<8x16xf32>
    %43 = vector.extract_strided_slice %22 {offsets = [0, 0], sizes = [8, 48], strides = [1, 1]} : vector<8x64xf32> to vector<8x48xf32>
    %cst_16 = arith.constant 5.000000e-01 : f32
    %44 = vector.broadcast %cst_16 : f32 to vector<8x48xf32>
    %45 = arith.mulf %44, %43 : vector<8x48xf32>
    %46 = math.tanh %45 : vector<8x48xf32>
    %cst_17 = arith.constant 5.000000e-01 : f32
    %47 = vector.broadcast %cst_17 : f32 to vector<8x48xf32>
    %48 = arith.mulf %47, %46 : vector<8x48xf32>
    %cst_18 = arith.constant 5.000000e-01 : f32
    %49 = vector.broadcast %cst_18 : f32 to vector<8x48xf32>
    %50 = arith.addf %48, %49 : vector<8x48xf32>
    %51 = vector.extract_strided_slice %22 {offsets = [0, 48], sizes = [8, 16], strides = [1, 1]} : vector<8x64xf32> to vector<8x16xf32>
    %52 = math.tanh %51 : vector<8x16xf32>
    %53 = vector.extract_strided_slice %50 {offsets = [0, 16], sizes = [8, 16], strides = [1, 1]} : vector<8x48xf32> to vector<8x16xf32>
    %54 = arith.mulf %53, %42 : vector<8x16xf32>
    %55 = vector.extract_strided_slice %50 {offsets = [0, 0], sizes = [8, 16], strides = [1, 1]} : vector<8x48xf32> to vector<8x16xf32>
    %56 = arith.mulf %55, %52 : vector<8x16xf32>
    %57 = arith.addf %54, %56 : vector<8x16xf32>
    %58 = vector.extract_strided_slice %50 {offsets = [0, 32], sizes = [8, 16], strides = [1, 1]} : vector<8x48xf32> to vector<8x16xf32>
    %59 = math.tanh %57 : vector<8x16xf32>
    %60 = arith.mulf %58, %59 : vector<8x16xf32>
    %61 = arith.addi %4, %c0_i32_8 : i32
    %62 = arith.index_cast %61 : i32 to index
    %c0_19 = arith.constant 0 : index
    %c0_20 = arith.constant 0 : index
    %63 = vector.load %arg4[%62, %c0_19, %c0_20] : memref<8x8x32xf32, #tpu.memory_space<vmem>>, vector<1x8x16xf32>
    %64 = vector.shape_cast %63 : vector<1x8x16xf32> to vector<8x16xf32>
    %65 = vector.shape_cast %41 : vector<8x16xf32> to vector<1x8x16xf32>
    tpu.vector_store %arg4[%62, %c0_19, %c0_20], %65 {strides = array<i32>} : memref<8x8x32xf32, #tpu.memory_space<vmem>>, vector<1x8x16xf32>,
    %c3_i32_21 = arith.constant 3 : i32
    %66 = arith.subi %c3_i32_21, %c0_i32_8 : i32
    %67 = arith.addi %6, %66 : i32
    %68 = arith.index_cast %67 : i32 to index
    %c0_22 = arith.constant 0 : index
    %c16 = arith.constant 16 : index
    %69 = vector.load %arg4[%68, %c0_22, %c16] : memref<8x8x32xf32, #tpu.memory_space<vmem>>, vector<1x8x16xf32>
    %70 = vector.shape_cast %69 : vector<1x8x16xf32> to vector<8x16xf32>
    %71 = vector.shape_cast %60 : vector<8x16xf32> to vector<1x8x16xf32>
    tpu.vector_store %arg4[%68, %c0_22, %c16], %71 {strides = array<i32>} : memref<8x8x32xf32, #tpu.memory_space<vmem>>, vector<1x8x16xf32>,
    %72 = tpu.concatenate %41, %60 in 1 : vector<8x16xf32>, vector<8x16xf32> -> vector<8x32xf32>
    %73 = tpu.concatenate %38, %57 in 1 : vector<8x16xf32>, vector<8x16xf32> -> vector<8x32xf32>
    %c1_i32_23 = arith.constant 1 : i32
    %cst_24 = arith.constant dense<0.000000e+00> : vector<8x128xf32>
    %74 = tpu.matmul %72, %3, %cst_24 {dimension_numbers = #tpu.dot_dimension_numbers<[1], [0], [0], [1], [0, 0, 1, 1], [], []>} : vector<8x32xf32>, vector<32x128xf32>, vector<8x128xf32> -> vector<8x128xf32>
    %75 = arith.index_cast %c1_i32_23 : i32 to index
    %c0_25 = arith.constant 0 : index
    %c0_26 = arith.constant 0 : index
    %76 = vector.load %arg1[%75, %c0_25, %c0_26] : memref<4x8x64xf32, #tpu.memory_space<vmem>>, vector<1x8x64xf32>
    %77 = vector.shape_cast %76 : vector<1x8x64xf32> to vector<8x64xf32>
    %78 = vector.extract_strided_slice %74 {offsets = [0, 0], sizes = [8, 64], strides = [1, 1]} : vector<8x128xf32> to vector<8x64xf32>
    %79 = arith.addf %77, %78 : vector<8x64xf32>
    %c3_i32_27 = arith.constant 3 : i32
    %80 = arith.subi %c3_i32_27, %c1_i32_23 : i32
    %81 = arith.index_cast %80 : i32 to index
    %c0_28 = arith.constant 0 : index
    %c0_29 = arith.constant 0 : index
    %82 = vector.load %arg2[%81, %c0_28, %c0_29] : memref<4x8x64xf32, #tpu.memory_space<vmem>>, vector<1x8x64xf32>
    %83 = vector.shape_cast %82 : vector<1x8x64xf32> to vector<8x64xf32>
    %84 = vector.extract_strided_slice %74 {offsets = [0, 64], sizes = [8, 64], strides = [1, 1]} : vector<8x128xf32> to vector<8x64xf32>
    %85 = arith.addf %83, %84 : vector<8x64xf32>
    %86 = vector.extract_strided_slice %73 {offsets = [0, 0], sizes = [8, 16], strides = [1, 1]} : vector<8x32xf32> to vector<8x16xf32>
    %87 = vector.extract_strided_slice %79 {offsets = [0, 0], sizes = [8, 48], strides = [1, 1]} : vector<8x64xf32> to vector<8x48xf32>
    %cst_30 = arith.constant 5.000000e-01 : f32
    %88 = vector.broadcast %cst_30 : f32 to vector<8x48xf32>
    %89 = arith.mulf %88, %87 : vector<8x48xf32>
    %90 = math.tanh %89 : vector<8x48xf32>
    %cst_31 = arith.constant 5.000000e-01 : f32
    %91 = vector.broadcast %cst_31 : f32 to vector<8x48xf32>
    %92 = arith.mulf %91, %90 : vector<8x48xf32>
    %cst_32 = arith.constant 5.000000e-01 : f32
    %93 = vector.broadcast %cst_32 : f32 to vector<8x48xf32>
    %94 = arith.addf %92, %93 : vector<8x48xf32>
    %95 = vector.extract_strided_slice %79 {offsets = [0, 48], sizes = [8, 16], strides = [1, 1]} : vector<8x64xf32> to vector<8x16xf32>
    %96 = math.tanh %95 : vector<8x16xf32>
    %97 = vector.extract_strided_slice %94 {offsets = [0, 16], sizes = [8, 16], strides = [1, 1]} : vector<8x48xf32> to vector<8x16xf32>
    %98 = arith.mulf %97, %86 : vector<8x16xf32>
    %99 = vector.extract_strided_slice %94 {offsets = [0, 0], sizes = [8, 16], strides = [1, 1]} : vector<8x48xf32> to vector<8x16xf32>
    %100 = arith.mulf %99, %96 : vector<8x16xf32>
    %101 = arith.addf %98, %100 : vector<8x16xf32>
    %102 = vector.extract_strided_slice %94 {offsets = [0, 32], sizes = [8, 16], strides = [1, 1]} : vector<8x48xf32> to vector<8x16xf32>
    %103 = math.tanh %101 : vector<8x16xf32>
    %104 = arith.mulf %102, %103 : vector<8x16xf32>
    %105 = vector.extract_strided_slice %73 {offsets = [0, 16], sizes = [8, 16], strides = [1, 1]} : vector<8x32xf32> to vector<8x16xf32>
    %106 = vector.extract_strided_slice %85 {offsets = [0, 0], sizes = [8, 48], strides = [1, 1]} : vector<8x64xf32> to vector<8x48xf32>
    %cst_33 = arith.constant 5.000000e-01 : f32
    %107 = vector.broadcast %cst_33 : f32 to vector<8x48xf32>
    %108 = arith.mulf %107, %106 : vector<8x48xf32>
    %109 = math.tanh %108 : vector<8x48xf32>
    %cst_34 = arith.constant 5.000000e-01 : f32
    %110 = vector.broadcast %cst_34 : f32 to vector<8x48xf32>
    %111 = arith.mulf %110, %109 : vector<8x48xf32>
    %cst_35 = arith.constant 5.000000e-01 : f32
    %112 = vector.broadcast %cst_35 : f32 to vector<8x48xf32>
    %113 = arith.addf %111, %112 : vector<8x48xf32>
    %114 = vector.extract_strided_slice %85 {offsets = [0, 48], sizes = [8, 16], strides = [1, 1]} : vector<8x64xf32> to vector<8x16xf32>
    %115 = math.tanh %114 : vector<8x16xf32>
    %116 = vector.extract_strided_slice %113 {offsets = [0, 16], sizes = [8, 16], strides = [1, 1]} : vector<8x48xf32> to vector<8x16xf32>
    %117 = arith.mulf %116, %105 : vector<8x16xf32>
    %118 = vector.extract_strided_slice %113 {offsets = [0, 0], sizes = [8, 16], strides = [1, 1]} : vector<8x48xf32> to vector<8x16xf32>
    %119 = arith.mulf %118, %115 : vector<8x16xf32>
    %120 = arith.addf %117, %119 : vector<8x16xf32>
    %121 = vector.extract_strided_slice %113 {offsets = [0, 32], sizes = [8, 16], strides = [1, 1]} : vector<8x48xf32> to vector<8x16xf32>
    %122 = math.tanh %120 : vector<8x16xf32>
    %123 = arith.mulf %121, %122 : vector<8x16xf32>
    %124 = arith.addi %4, %c1_i32_23 : i32
    %125 = arith.index_cast %124 : i32 to index
    %c0_36 = arith.constant 0 : index
    %c0_37 = arith.constant 0 : index
    %126 = vector.load %arg4[%125, %c0_36, %c0_37] : memref<8x8x32xf32, #tpu.memory_space<vmem>>, vector<1x8x16xf32>
    %127 = vector.shape_cast %126 : vector<1x8x16xf32> to vector<8x16xf32>
    %128 = vector.shape_cast %104 : vector<8x16xf32> to vector<1x8x16xf32>
    tpu.vector_store %arg4[%125, %c0_36, %c0_37], %128 {strides = array<i32>} : memref<8x8x32xf32, #tpu.memory_space<vmem>>, vector<1x8x16xf32>,
    %c3_i32_38 = arith.constant 3 : i32
    %129 = arith.subi %c3_i32_38, %c1_i32_23 : i32
    %130 = arith.addi %6, %129 : i32
    %131 = arith.index_cast %130 : i32 to index
    %c0_39 = arith.constant 0 : index
    %c16_40 = arith.constant 16 : index
    %132 = vector.load %arg4[%131, %c0_39, %c16_40] : memref<8x8x32xf32, #tpu.memory_space<vmem>>, vector<1x8x16xf32>
    %133 = vector.shape_cast %132 : vector<1x8x16xf32> to vector<8x16xf32>
    %134 = vector.shape_cast %123 : vector<8x16xf32> to vector<1x8x16xf32>
    tpu.vector_store %arg4[%131, %c0_39, %c16_40], %134 {strides = array<i32>} : memref<8x8x32xf32, #tpu.memory_space<vmem>>, vector<1x8x16xf32>,
    %135 = tpu.concatenate %104, %123 in 1 : vector<8x16xf32>, vector<8x16xf32> -> vector<8x32xf32>
    %136 = tpu.concatenate %101, %120 in 1 : vector<8x16xf32>, vector<8x16xf32> -> vector<8x32xf32>
    %c2_i32 = arith.constant 2 : i32
    %cst_41 = arith.constant dense<0.000000e+00> : vector<8x128xf32>
    %137 = tpu.matmul %135, %3, %cst_41 {dimension_numbers = #tpu.dot_dimension_numbers<[1], [0], [0], [1], [0, 0, 1, 1], [], []>} : vector<8x32xf32>, vector<32x128xf32>, vector<8x128xf32> -> vector<8x128xf32>
    %138 = arith.index_cast %c2_i32 : i32 to index
    %c0_42 = arith.constant 0 : index
    %c0_43 = arith.constant 0 : index
    %139 = vector.load %arg1[%138, %c0_42, %c0_43] : memref<4x8x64xf32, #tpu.memory_space<vmem>>, vector<1x8x64xf32>
    %140 = vector.shape_cast %139 : vector<1x8x64xf32> to vector<8x64xf32>
    %141 = vector.extract_strided_slice %137 {offsets = [0, 0], sizes = [8, 64], strides = [1, 1]} : vector<8x128xf32> to vector<8x64xf32>
    %142 = arith.addf %140, %141 : vector<8x64xf32>
    %c3_i32_44 = arith.constant 3 : i32
    %143 = arith.subi %c3_i32_44, %c2_i32 : i32
    %144 = arith.index_cast %143 : i32 to index
    %c0_45 = arith.constant 0 : index
    %c0_46 = arith.constant 0 : index
    %145 = vector.load %arg2[%144, %c0_45, %c0_46] : memref<4x8x64xf32, #tpu.memory_space<vmem>>, vector<1x8x64xf32>
    %146 = vector.shape_cast %145 : vector<1x8x64xf32> to vector<8x64xf32>
    %147 = vector.extract_strided_slice %137 {offsets = [0, 64], sizes = [8, 64], strides = [1, 1]} : vector<8x128xf32> to vector<8x64xf32>
    %148 = arith.addf %146, %147 : vector<8x64xf32>
    %149 = vector.extract_strided_slice %136 {offsets = [0, 0], sizes = [8, 16], strides = [1, 1]} : vector<8x32xf32> to vector<8x16xf32>
    %150 = vector.extract_strided_slice %142 {offsets = [0, 0], sizes = [8, 48], strides = [1, 1]} : vector<8x64xf32> to vector<8x48xf32>
    %cst_47 = arith.constant 5.000000e-01 : f32
    %151 = vector.broadcast %cst_47 : f32 to vector<8x48xf32>
    %152 = arith.mulf %151, %150 : vector<8x48xf32>
    %153 = math.tanh %152 : vector<8x48xf32>
    %cst_48 = arith.constant 5.000000e-01 : f32
    %154 = vector.broadcast %cst_48 : f32 to vector<8x48xf32>
    %155 = arith.mulf %154, %153 : vector<8x48xf32>
    %cst_49 = arith.constant 5.000000e-01 : f32
    %156 = vector.broadcast %cst_49 : f32 to vector<8x48xf32>
    %157 = arith.addf %155, %156 : vector<8x48xf32>
    %158 = vector.extract_strided_slice %142 {offsets = [0, 48], sizes = [8, 16], strides = [1, 1]} : vector<8x64xf32> to vector<8x16xf32>
    %159 = math.tanh %158 : vector<8x16xf32>
    %160 = vector.extract_strided_slice %157 {offsets = [0, 16], sizes = [8, 16], strides = [1, 1]} : vector<8x48xf32> to vector<8x16xf32>
    %161 = arith.mulf %160, %149 : vector<8x16xf32>
    %162 = vector.extract_strided_slice %157 {offsets = [0, 0], sizes = [8, 16], strides = [1, 1]} : vector<8x48xf32> to vector<8x16xf32>
    %163 = arith.mulf %162, %159 : vector<8x16xf32>
    %164 = arith.addf %161, %163 : vector<8x16xf32>
    %165 = vector.extract_strided_slice %157 {offsets = [0, 32], sizes = [8, 16], strides = [1, 1]} : vector<8x48xf32> to vector<8x16xf32>
    %166 = math.tanh %164 : vector<8x16xf32>
    %167 = arith.mulf %165, %166 : vector<8x16xf32>
    %168 = vector.extract_strided_slice %136 {offsets = [0, 16], sizes = [8, 16], strides = [1, 1]} : vector<8x32xf32> to vector<8x16xf32>
    %169 = vector.extract_strided_slice %148 {offsets = [0, 0], sizes = [8, 48], strides = [1, 1]} : vector<8x64xf32> to vector<8x48xf32>
    %cst_50 = arith.constant 5.000000e-01 : f32
    %170 = vector.broadcast %cst_50 : f32 to vector<8x48xf32>
    %171 = arith.mulf %170, %169 : vector<8x48xf32>
    %172 = math.tanh %171 : vector<8x48xf32>
    %cst_51 = arith.constant 5.000000e-01 : f32
    %173 = vector.broadcast %cst_51 : f32 to vector<8x48xf32>
    %174 = arith.mulf %173, %172 : vector<8x48xf32>
    %cst_52 = arith.constant 5.000000e-01 : f32
    %175 = vector.broadcast %cst_52 : f32 to vector<8x48xf32>
    %176 = arith.addf %174, %175 : vector<8x48xf32>
    %177 = vector.extract_strided_slice %148 {offsets = [0, 48], sizes = [8, 16], strides = [1, 1]} : vector<8x64xf32> to vector<8x16xf32>
    %178 = math.tanh %177 : vector<8x16xf32>
    %179 = vector.extract_strided_slice %176 {offsets = [0, 16], sizes = [8, 16], strides = [1, 1]} : vector<8x48xf32> to vector<8x16xf32>
    %180 = arith.mulf %179, %168 : vector<8x16xf32>
    %181 = vector.extract_strided_slice %176 {offsets = [0, 0], sizes = [8, 16], strides = [1, 1]} : vector<8x48xf32> to vector<8x16xf32>
    %182 = arith.mulf %181, %178 : vector<8x16xf32>
    %183 = arith.addf %180, %182 : vector<8x16xf32>
    %184 = vector.extract_strided_slice %176 {offsets = [0, 32], sizes = [8, 16], strides = [1, 1]} : vector<8x48xf32> to vector<8x16xf32>
    %185 = math.tanh %183 : vector<8x16xf32>
    %186 = arith.mulf %184, %185 : vector<8x16xf32>
    %187 = arith.addi %4, %c2_i32 : i32
    %188 = arith.index_cast %187 : i32 to index
    %c0_53 = arith.constant 0 : index
    %c0_54 = arith.constant 0 : index
    %189 = vector.load %arg4[%188, %c0_53, %c0_54] : memref<8x8x32xf32, #tpu.memory_space<vmem>>, vector<1x8x16xf32>
    %190 = vector.shape_cast %189 : vector<1x8x16xf32> to vector<8x16xf32>
    %191 = vector.shape_cast %167 : vector<8x16xf32> to vector<1x8x16xf32>
    tpu.vector_store %arg4[%188, %c0_53, %c0_54], %191 {strides = array<i32>} : memref<8x8x32xf32, #tpu.memory_space<vmem>>, vector<1x8x16xf32>,
    %c3_i32_55 = arith.constant 3 : i32
    %192 = arith.subi %c3_i32_55, %c2_i32 : i32
    %193 = arith.addi %6, %192 : i32
    %194 = arith.index_cast %193 : i32 to index
    %c0_56 = arith.constant 0 : index
    %c16_57 = arith.constant 16 : index
    %195 = vector.load %arg4[%194, %c0_56, %c16_57] : memref<8x8x32xf32, #tpu.memory_space<vmem>>, vector<1x8x16xf32>
    %196 = vector.shape_cast %195 : vector<1x8x16xf32> to vector<8x16xf32>
    %197 = vector.shape_cast %186 : vector<8x16xf32> to vector<1x8x16xf32>
    tpu.vector_store %arg4[%194, %c0_56, %c16_57], %197 {strides = array<i32>} : memref<8x8x32xf32, #tpu.memory_space<vmem>>, vector<1x8x16xf32>,
    %198 = tpu.concatenate %167, %186 in 1 : vector<8x16xf32>, vector<8x16xf32> -> vector<8x32xf32>
    %199 = tpu.concatenate %164, %183 in 1 : vector<8x16xf32>, vector<8x16xf32> -> vector<8x32xf32>
    %c3_i32_58 = arith.constant 3 : i32
    %cst_59 = arith.constant dense<0.000000e+00> : vector<8x128xf32>
    %200 = tpu.matmul %198, %3, %cst_59 {dimension_numbers = #tpu.dot_dimension_numbers<[1], [0], [0], [1], [0, 0, 1, 1], [], []>} : vector<8x32xf32>, vector<32x128xf32>, vector<8x128xf32> -> vector<8x128xf32>
    %201 = arith.index_cast %c3_i32_58 : i32 to index
    %c0_60 = arith.constant 0 : index
    %c0_61 = arith.constant 0 : index
    %202 = vector.load %arg1[%201, %c0_60, %c0_61] : memref<4x8x64xf32, #tpu.memory_space<vmem>>, vector<1x8x64xf32>
    %203 = vector.shape_cast %202 : vector<1x8x64xf32> to vector<8x64xf32>
    %204 = vector.extract_strided_slice %200 {offsets = [0, 0], sizes = [8, 64], strides = [1, 1]} : vector<8x128xf32> to vector<8x64xf32>
    %205 = arith.addf %203, %204 : vector<8x64xf32>
    %c3_i32_62 = arith.constant 3 : i32
    %206 = arith.subi %c3_i32_62, %c3_i32_58 : i32
    %207 = arith.index_cast %206 : i32 to index
    %c0_63 = arith.constant 0 : index
    %c0_64 = arith.constant 0 : index
    %208 = vector.load %arg2[%207, %c0_63, %c0_64] : memref<4x8x64xf32, #tpu.memory_space<vmem>>, vector<1x8x64xf32>
    %209 = vector.shape_cast %208 : vector<1x8x64xf32> to vector<8x64xf32>
    %210 = vector.extract_strided_slice %200 {offsets = [0, 64], sizes = [8, 64], strides = [1, 1]} : vector<8x128xf32> to vector<8x64xf32>
    %211 = arith.addf %209, %210 : vector<8x64xf32>
    %212 = vector.extract_strided_slice %199 {offsets = [0, 0], sizes = [8, 16], strides = [1, 1]} : vector<8x32xf32> to vector<8x16xf32>
    %213 = vector.extract_strided_slice %205 {offsets = [0, 0], sizes = [8, 48], strides = [1, 1]} : vector<8x64xf32> to vector<8x48xf32>
    %cst_65 = arith.constant 5.000000e-01 : f32
    %214 = vector.broadcast %cst_65 : f32 to vector<8x48xf32>
    %215 = arith.mulf %214, %213 : vector<8x48xf32>
    %216 = math.tanh %215 : vector<8x48xf32>
    %cst_66 = arith.constant 5.000000e-01 : f32
    %217 = vector.broadcast %cst_66 : f32 to vector<8x48xf32>
    %218 = arith.mulf %217, %216 : vector<8x48xf32>
    %cst_67 = arith.constant 5.000000e-01 : f32
    %219 = vector.broadcast %cst_67 : f32 to vector<8x48xf32>
    %220 = arith.addf %218, %219 : vector<8x48xf32>
    %221 = vector.extract_strided_slice %205 {offsets = [0, 48], sizes = [8, 16], strides = [1, 1]} : vector<8x64xf32> to vector<8x16xf32>
    %222 = math.tanh %221 : vector<8x16xf32>
    %223 = vector.extract_strided_slice %220 {offsets = [0, 16], sizes = [8, 16], strides = [1, 1]} : vector<8x48xf32> to vector<8x16xf32>
    %224 = arith.mulf %223, %212 : vector<8x16xf32>
    %225 = vector.extract_strided_slice %220 {offsets = [0, 0], sizes = [8, 16], strides = [1, 1]} : vector<8x48xf32> to vector<8x16xf32>
    %226 = arith.mulf %225, %222 : vector<8x16xf32>
    %227 = arith.addf %224, %226 : vector<8x16xf32>
    %228 = vector.extract_strided_slice %220 {offsets = [0, 32], sizes = [8, 16], strides = [1, 1]} : vector<8x48xf32> to vector<8x16xf32>
    %229 = math.tanh %227 : vector<8x16xf32>
    %230 = arith.mulf %228, %229 : vector<8x16xf32>
    %231 = vector.extract_strided_slice %199 {offsets = [0, 16], sizes = [8, 16], strides = [1, 1]} : vector<8x32xf32> to vector<8x16xf32>
    %232 = vector.extract_strided_slice %211 {offsets = [0, 0], sizes = [8, 48], strides = [1, 1]} : vector<8x64xf32> to vector<8x48xf32>
    %cst_68 = arith.constant 5.000000e-01 : f32
    %233 = vector.broadcast %cst_68 : f32 to vector<8x48xf32>
    %234 = arith.mulf %233, %232 : vector<8x48xf32>
    %235 = math.tanh %234 : vector<8x48xf32>
    %cst_69 = arith.constant 5.000000e-01 : f32
    %236 = vector.broadcast %cst_69 : f32 to vector<8x48xf32>
    %237 = arith.mulf %236, %235 : vector<8x48xf32>
    %cst_70 = arith.constant 5.000000e-01 : f32
    %238 = vector.broadcast %cst_70 : f32 to vector<8x48xf32>
    %239 = arith.addf %237, %238 : vector<8x48xf32>
    %240 = vector.extract_strided_slice %211 {offsets = [0, 48], sizes = [8, 16], strides = [1, 1]} : vector<8x64xf32> to vector<8x16xf32>
    %241 = math.tanh %240 : vector<8x16xf32>
    %242 = vector.extract_strided_slice %239 {offsets = [0, 16], sizes = [8, 16], strides = [1, 1]} : vector<8x48xf32> to vector<8x16xf32>
    %243 = arith.mulf %242, %231 : vector<8x16xf32>
    %244 = vector.extract_strided_slice %239 {offsets = [0, 0], sizes = [8, 16], strides = [1, 1]} : vector<8x48xf32> to vector<8x16xf32>
    %245 = arith.mulf %244, %241 : vector<8x16xf32>
    %246 = arith.addf %243, %245 : vector<8x16xf32>
    %247 = vector.extract_strided_slice %239 {offsets = [0, 32], sizes = [8, 16], strides = [1, 1]} : vector<8x48xf32> to vector<8x16xf32>
    %248 = math.tanh %246 : vector<8x16xf32>
    %249 = arith.mulf %247, %248 : vector<8x16xf32>
    %250 = arith.addi %4, %c3_i32_58 : i32
    %251 = arith.index_cast %250 : i32 to index
    %c0_71 = arith.constant 0 : index
    %c0_72 = arith.constant 0 : index
    %252 = vector.load %arg4[%251, %c0_71, %c0_72] : memref<8x8x32xf32, #tpu.memory_space<vmem>>, vector<1x8x16xf32>
    %253 = vector.shape_cast %252 : vector<1x8x16xf32> to vector<8x16xf32>
    %254 = vector.shape_cast %230 : vector<8x16xf32> to vector<1x8x16xf32>
    tpu.vector_store %arg4[%251, %c0_71, %c0_72], %254 {strides = array<i32>} : memref<8x8x32xf32, #tpu.memory_space<vmem>>, vector<1x8x16xf32>,
    %c3_i32_73 = arith.constant 3 : i32
    %255 = arith.subi %c3_i32_73, %c3_i32_58 : i32
    %256 = arith.addi %6, %255 : i32
    %257 = arith.index_cast %256 : i32 to index
    %c0_74 = arith.constant 0 : index
    %c16_75 = arith.constant 16 : index
    %258 = vector.load %arg4[%257, %c0_74, %c16_75] : memref<8x8x32xf32, #tpu.memory_space<vmem>>, vector<1x8x16xf32>
    %259 = vector.shape_cast %258 : vector<1x8x16xf32> to vector<8x16xf32>
    %260 = vector.shape_cast %249 : vector<8x16xf32> to vector<1x8x16xf32>
    tpu.vector_store %arg4[%257, %c0_74, %c16_75], %260 {strides = array<i32>} : memref<8x8x32xf32, #tpu.memory_space<vmem>>, vector<1x8x16xf32>,
    %261 = tpu.concatenate %230, %249 in 1 : vector<8x16xf32>, vector<8x16xf32> -> vector<8x32xf32>
    %262 = tpu.concatenate %227, %246 in 1 : vector<8x16xf32>, vector<8x16xf32> -> vector<8x32xf32>
    %c4_i32_76 = arith.constant 4 : i32
    %c0_77 = arith.constant 0 : index
    %c0_78 = arith.constant 0 : index
    %c0_79 = arith.constant 0 : index
    %263 = vector.load %arg7[%c0_77, %c0_78, %c0_79] : memref<2x8x32xf32, #tpu.memory_space<vmem>>, vector<1x8x32xf32>
    %264 = vector.shape_cast %263 : vector<1x8x32xf32> to vector<8x32xf32>
    %265 = vector.shape_cast %261 : vector<8x32xf32> to vector<1x8x32xf32>
    tpu.vector_store %arg7[%c0_77, %c0_78, %c0_79], %265 {strides = array<i32>} : memref<2x8x32xf32, #tpu.memory_space<vmem>>, vector<1x8x32xf32>,
    %c1_80 = arith.constant 1 : index
    %c0_81 = arith.constant 0 : index
    %c0_82 = arith.constant 0 : index
    %266 = vector.load %arg7[%c1_80, %c0_81, %c0_82] : memref<2x8x32xf32, #tpu.memory_space<vmem>>, vector<1x8x32xf32>
    %267 = vector.shape_cast %266 : vector<1x8x32xf32> to vector<8x32xf32>
    %268 = vector.shape_cast %262 : vector<8x32xf32> to vector<1x8x32xf32>
    tpu.vector_store %arg7[%c1_80, %c0_81, %c0_82], %268 {strides = array<i32>} : memref<2x8x32xf32, #tpu.memory_space<vmem>>, vector<1x8x32xf32>,
    %c1_i32_83 = arith.constant 1 : i32
    %269 = arith.cmpi eq, %arg0, %c1_i32_83 : i32
    %270 = arith.extui %269 : i1 to i32
    %c0_i32_84 = arith.constant 0 : i32
    %271 = arith.cmpi ne, %270, %c0_i32_84 : i32
    scf.if %271 {
      %272 = vector.extract_strided_slice %261 {offsets = [0, 0], sizes = [8, 16], strides = [1, 1]} : vector<8x32xf32> to vector<8x16xf32>
      %c0_85 = arith.constant 0 : index
      %c0_86 = arith.constant 0 : index
      %c0_87 = arith.constant 0 : index
      %273 = vector.load %arg5[%c0_85, %c0_86, %c0_87] : memref<2x8x16xf32, #tpu.memory_space<vmem>>, vector<1x8x16xf32>
      %274 = vector.shape_cast %273 : vector<1x8x16xf32> to vector<8x16xf32>
      %275 = vector.shape_cast %272 : vector<8x16xf32> to vector<1x8x16xf32>
      tpu.vector_store %arg5[%c0_85, %c0_86, %c0_87], %275 {strides = array<i32>} : memref<2x8x16xf32, #tpu.memory_space<vmem>>, vector<1x8x16xf32>,
      %276 = vector.extract_strided_slice %261 {offsets = [0, 16], sizes = [8, 16], strides = [1, 1]} : vector<8x32xf32> to vector<8x16xf32>
      %c1_88 = arith.constant 1 : index
      %c0_89 = arith.constant 0 : index
      %c0_90 = arith.constant 0 : index
      %277 = vector.load %arg5[%c1_88, %c0_89, %c0_90] : memref<2x8x16xf32, #tpu.memory_space<vmem>>, vector<1x8x16xf32>
      %278 = vector.shape_cast %277 : vector<1x8x16xf32> to vector<8x16xf32>
      %279 = vector.shape_cast %276 : vector<8x16xf32> to vector<1x8x16xf32>
      tpu.vector_store %arg5[%c1_88, %c0_89, %c0_90], %279 {strides = array<i32>} : memref<2x8x16xf32, #tpu.memory_space<vmem>>, vector<1x8x16xf32>,
      %280 = vector.extract_strided_slice %262 {offsets = [0, 0], sizes = [8, 16], strides = [1, 1]} : vector<8x32xf32> to vector<8x16xf32>
      %c0_91 = arith.constant 0 : index
      %c0_92 = arith.constant 0 : index
      %c0_93 = arith.constant 0 : index
      %281 = vector.load %arg6[%c0_91, %c0_92, %c0_93] : memref<2x8x16xf32, #tpu.memory_space<vmem>>, vector<1x8x16xf32>
      %282 = vector.shape_cast %281 : vector<1x8x16xf32> to vector<8x16xf32>
      %283 = vector.shape_cast %280 : vector<8x16xf32> to vector<1x8x16xf32>
      tpu.vector_store %arg6[%c0_91, %c0_92, %c0_93], %283 {strides = array<i32>} : memref<2x8x16xf32, #tpu.memory_space<vmem>>, vector<1x8x16xf32>,
      %284 = vector.extract_strided_slice %262 {offsets = [0, 16], sizes = [8, 16], strides = [1, 1]} : vector<8x32xf32> to vector<8x16xf32>
      %c1_94 = arith.constant 1 : index
      %c0_95 = arith.constant 0 : index
      %c0_96 = arith.constant 0 : index
      %285 = vector.load %arg6[%c1_94, %c0_95, %c0_96] : memref<2x8x16xf32, #tpu.memory_space<vmem>>, vector<1x8x16xf32>
      %286 = vector.shape_cast %285 : vector<1x8x16xf32> to vector<8x16xf32>
      %287 = vector.shape_cast %284 : vector<8x16xf32> to vector<1x8x16xf32>
      tpu.vector_store %arg6[%c1_94, %c0_95, %c0_96], %287 {strides = array<i32>} : memref<2x8x16xf32, #tpu.memory_space<vmem>>, vector<1x8x16xf32>,
    } else {
    }
    return
  }
  func.func @transform_0(%arg0: i32) -> (i32, i32, i32) {
    %c0_i32 = arith.constant 0 : i32
    %c0_i32_0 = arith.constant 0 : i32
    %c0_i32_1 = arith.constant 0 : i32
    return %arg0, %c0_i32, %c0_i32_0 : i32, i32, i32
  }
  func.func @transform_1(%arg0: i32) -> (i32, i32, i32) {
    %c1_i32 = arith.constant 1 : i32
    %0 = arith.subi %c1_i32, %arg0 : i32
    %c0_i32 = arith.constant 0 : i32
    %c0_i32_0 = arith.constant 0 : i32
    %c0_i32_1 = arith.constant 0 : i32
    return %0, %c0_i32, %c0_i32_0 : i32, i32, i32
  }
  func.func @transform_2(%arg0: i32) -> (i32, i32) {
    %c0_i32 = arith.constant 0 : i32
    %c0_i32_0 = arith.constant 0 : i32
    %c0_i32_1 = arith.constant 0 : i32
    return %c0_i32, %c0_i32_0 : i32, i32
  }
  func.func @transform_3(%arg0: i32) -> (i32, i32, i32) {
    %c0_i32 = arith.constant 0 : i32
    %c0_i32_0 = arith.constant 0 : i32
    %c0_i32_1 = arith.constant 0 : i32
    %c0_i32_2 = arith.constant 0 : i32
    return %c0_i32, %c0_i32_0, %c0_i32_1 : i32, i32, i32
  }
  func.func @transform_4(%arg0: i32) -> (i32, i32, i32) {
    %c0_i32 = arith.constant 0 : i32
    %c0_i32_0 = arith.constant 0 : i32
    %c0_i32_1 = arith.constant 0 : i32
    %c0_i32_2 = arith.constant 0 : i32
    return %c0_i32, %c0_i32_0, %c0_i32_1 : i32, i32, i32
  }
  func.func @transform_5(%arg0: i32) -> (i32, i32, i32) {
    %c0_i32 = arith.constant 0 : i32
    %c0_i32_0 = arith.constant 0 : i32
    %c0_i32_1 = arith.constant 0 : i32
    %c0_i32_2 = arith.constant 0 : i32
    return %c0_i32, %c0_i32_0, %c0_i32_1 : i32, i32, i32
  }
}

</mosaic_0001>

<llo_original>
// kernel: _lambda_.1
$region0: #{_lambda_.1}
  #allocation0 [shape = 'u32[]', space=smem, size = 0x4, offset = 0x4, fixed_abs, tag = 'smem constant byte address 0x4 - core index']
  #allocation1 [shape = 'u32[144,128]{1,0:T(1,128)}', space=vmem, size = 0x12000, scoped, tag = 'internal scratch']
  #allocation2 [shape = 'f32[2,8,32]{2,1,0:T(8,128)}', space=vmem, size = 0x2000, scoped, tag = 'scratch operand']
  %s0 = inlined_call_operand.vmem [shape: f32[8,8,64], index: 0, kind: input, shape index: {}]
  %s1 = inlined_call_operand.vmem [shape: f32[8,8,64], index: 1, kind: input, shape index: {}]
  %s2 = inlined_call_operand.vmem [shape: f32[32,128], index: 2, kind: input, shape index: {}]
  %s3 = inlined_call_operand.vmem [shape: f32[8,8,32], index: 3, kind: output, shape index: {0}]
  %s4 = inlined_call_operand.vmem [shape: f32[2,8,16], index: 4, kind: output, shape index: {1}]
  %s5 = inlined_call_operand.vmem [shape: f32[2,8,16], index: 5, kind: output, shape index: {2}]
  %6 = xla_tuple %s3, %s4, %s5
  %s7 = sld [smem:[#allocation0]]
  $region69: #{_lambda_.1} parent=0
    _
  %s9 = ssub.s32 1, %s7
  %s10 = scalar_select 0, %s9, %s7
  loop: start=0, step=1, limit=4
  $region2: #{_lambda_.1} parent=0 // loop_pre_header
    _
  $region3: #{_lambda_.1} parent=0 // loop_header
    %s12 = sphi 0, %s16
    %p13 = scmp.ge.s32.totalorder %s12, 4
    %s22 = sphi 0, %s24
    %s25 = sphi 0, %s22
    %s26 = sphi 0, %s25
    %s42 = sphi 0, %s26
    %s50 = sphi 0, %s52
    %s53 = sphi 0, %s50
    %s54 = sphi 0, %s53
    %s70 = sphi 0, %s54
    %s74 = sphi 0, %s74
    %s76 = sphi 0, %s74
    %s77 = sphi 0, %s76
    %s91 = sphi 0, %s77
    %s95 = sphi 0, %s95
    %s97 = sphi 0, %s95
    %s98 = sphi 0, %s97
    %s112 = sphi 0, %s98
    %s116 = sphi 0, %s116
    %s118 = sphi 0, %s116
    %s119 = sphi 0, %s118
    %s133 = sphi 0, %s119
    %s137 = sphi 0, %s137
    %s139 = sphi 0, %s137
    %s140 = sphi 0, %s139
    %s154 = sphi 0, %s140
  $region4: #{_lambda_.1} parent=0 // loop_header_branch
    %15 = sbr.rel (%p13) target = $region8
  $region5: #{_lambda_.1} parent=0 // loop_body
    %s17 = ssub.s32 %s12, 1
    %s18 = ssub.s32 %s12, 2
    %s19 = sadd.s32 %s12, 1
    %s20 = ssub.s32 %s12, %s19
    %p21 = scmp.eq.s32.totalorder %s20, 0
    %s23 = sadd.s32 %s22, 1
    %s24 = scalar_select %p21, %s22, %s23
    %p27 = pneg %p21
    %p28 = scmp.eq.s32.totalorder %s12, 1
    %p29 = por %p27, %p28
    %p30 = scmp.ne.s32.totalorder %s22, %s25
    %p31 = scmp.eq.s32.totalorder %s12, 0
    %p32 = por %p30, %p31
    %p33 = scmp.ne.s32.totalorder %s22, %s25
    %p34 = scmp.eq.s32.totalorder %s17, 1
    %p35 = por %p33, %p34
    %p36 = scmp.ne.s32.totalorder %s25, %s26
    %p37 = scmp.eq.s32.totalorder %s17, 0
    %p38 = por %p36, %p37
    %p39 = scmp.ne.s32.totalorder %s25, %s26
    %p40 = scmp.eq.s32.totalorder %s18, 1
    %p41 = por %p39, %p40
    %p43 = scmp.ne.s32.totalorder %s26, %s42
    %p44 = scmp.eq.s32.totalorder %s18, 0
    %p45 = por %p43, %p44
    %s46 = ssub.s32 1, %s12
    %s47 = ssub.s32 1, %s19
    %s48 = ssub.s32 %s46, %s47
    %p49 = scmp.eq.s32.totalorder %s48, 0
    %s51 = sadd.s32 %s50, 1
    %s52 = scalar_select %p49, %s50, %s51
    %p55 = pneg %p49
    %p56 = scmp.eq.s32.totalorder %s12, 1
    %p57 = por %p55, %p56
    %p58 = scmp.ne.s32.totalorder %s50, %s53
    %p59 = scmp.eq.s32.totalorder %s12, 0
    %p60 = por %p58, %p59
    %p61 = scmp.ne.s32.totalorder %s50, %s53
    %p62 = scmp.eq.s32.totalorder %s17, 1
    %p63 = por %p61, %p62
    %p64 = scmp.ne.s32.totalorder %s53, %s54
    %p65 = scmp.eq.s32.totalorder %s17, 0
    %p66 = por %p64, %p65
    %p67 = scmp.ne.s32.totalorder %s53, %s54
    %p68 = scmp.eq.s32.totalorder %s18, 1
    %p69 = por %p67, %p68
    %p71 = scmp.ne.s32.totalorder %s54, %s70
    %p72 = scmp.eq.s32.totalorder %s18, 0
    %p73 = por %p71, %p72
    %s75 = sadd.s32 %s74, 1
    %p78 = scmp.eq.s32.totalorder %s12, 1
    %p79 = scmp.ne.s32.totalorder %s74, %s76
    %p80 = scmp.eq.s32.totalorder %s12, 0
    %p81 = por %p79, %p80
    %p82 = scmp.ne.s32.totalorder %s74, %s76
    %p83 = scmp.eq.s32.totalorder %s17, 1
    %p84 = por %p82, %p83
    %p85 = scmp.ne.s32.totalorder %s76, %s77
    %p86 = scmp.eq.s32.totalorder %s17, 0
    %p87 = por %p85, %p86
    %p88 = scmp.ne.s32.totalorder %s76, %s77
    %p89 = scmp.eq.s32.totalorder %s18, 1
    %p90 = por %p88, %p89
    %p92 = scmp.ne.s32.totalorder %s77, %s91
    %p93 = scmp.eq.s32.totalorder %s18, 0
    %p94 = por %p92, %p93
    %s96 = sadd.s32 %s95, 1
    %p99 = scmp.eq.s32.totalorder %s12, 1
    %p100 = scmp.ne.s32.totalorder %s95, %s97
    %p101 = scmp.eq.s32.totalorder %s12, 0
    %p102 = por %p100, %p101
    %p103 = scmp.ne.s32.totalorder %s95, %s97
    %p104 = scmp.eq.s32.totalorder %s17, 1
    %p105 = por %p103, %p104
    %p106 = scmp.ne.s32.totalorder %s97, %s98
    %p107 = scmp.eq.s32.totalorder %s17, 0
    %p108 = por %p106, %p107
    %p109 = scmp.ne.s32.totalorder %s97, %s98
    %p110 = scmp.eq.s32.totalorder %s18, 1
    %p111 = por %p109, %p110
    %p113 = scmp.ne.s32.totalorder %s98, %s112
    %p114 = scmp.eq.s32.totalorder %s18, 0
    %p115 = por %p113, %p114
    %s117 = sadd.s32 %s116, 1
    %p120 = scmp.eq.s32.totalorder %s12, 1
    %p121 = scmp.ne.s32.totalorder %s116, %s118
    %p122 = scmp.eq.s32.totalorder %s12, 0
    %p123 = por %p121, %p122
    %p124 = scmp.ne.s32.totalorder %s116, %s118
    %p125 = scmp.eq.s32.totalorder %s17, 1
    %p126 = por %p124, %p125
    %p127 = scmp.ne.s32.totalorder %s118, %s119
    %p128 = scmp.eq.s32.totalorder %s17, 0
    %p129 = por %p127, %p128
    %p130 = scmp.ne.s32.totalorder %s118, %s119
    %p131 = scmp.eq.s32.totalorder %s18, 1
    %p132 = por %p130, %p131
    %p134 = scmp.ne.s32.totalorder %s119, %s133
    %p135 = scmp.eq.s32.totalorder %s18, 0
    %p136 = por %p134, %p135
    %s138 = sadd.s32 %s137, 1
    %p141 = scmp.eq.s32.totalorder %s12, 1
    %p142 = scmp.ne.s32.totalorder %s137, %s139
    %p143 = scmp.eq.s32.totalorder %s12, 0
    %p144 = por %p142, %p143
    %p145 = scmp.ne.s32.totalorder %s137, %s139
    %p146 = scmp.eq.s32.totalorder %s17, 1
    %p147 = por %p145, %p146
    %p148 = scmp.ne.s32.totalorder %s139, %s140
    %p149 = scmp.eq.s32.totalorder %s17, 0
    %p150 = por %p148, %p149
    %p151 = scmp.ne.s32.totalorder %s139, %s140
    %p152 = scmp.eq.s32.totalorder %s18, 1
    %p153 = por %p151, %p152
    %p155 = scmp.ne.s32.totalorder %s140, %s154
    %p156 = scmp.eq.s32.totalorder %s18, 0
    %p157 = por %p155, %p156
    %p158 = scmp.le.s32.totalorder 1, %s12
    %p159 = scmp.lt.s32.totalorder %s12, 3
    %p160 = pnand %p158, %p159
    %p161 = pneg %p160
    // Predicated region
    $region9: #{_lambda_.1} parent=5 // pred_check
      _
    $region10: #{_lambda_.1} parent=5 // pred_check_branch
      %163 = sbr.rel (%p160) target = $region12
    $region11: #{_lambda_.1} parent=5 // pred_region
      %s164 = ssub.s32 %s12, 1
      // Predicated region
      $region13: #{_lambda_.1} parent=11 // pred_check
        %p165 = pneg %p87
      $region14: #{_lambda_.1} parent=11 // pred_check_branch
        %167 = sbr.rel (%p165) target = $region16
      $region15: #{_lambda_.1} parent=11 // pred_region
        _
      $region16: #{_lambda_.1} parent=11 // pred_fallthru
        _
    $region12: #{_lambda_.1} parent=5 // pred_fallthru
      _
    %p168 = scmp.lt.s32.totalorder %s12, 2
    // Predicated region
    $region17: #{_lambda_.1} parent=5 // pred_check
      %p169 = pneg %p168
    $region18: #{_lambda_.1} parent=5 // pred_check_branch
      %171 = sbr.rel (%p169) target = $region20
    $region19: #{_lambda_.1} parent=5 // pred_region
      // Predicated region
      $region21: #{_lambda_.1} parent=19 // pred_check
        %p172 = pneg %p32
      $region22: #{_lambda_.1} parent=19 // pred_check_branch
        %174 = sbr.rel (%p172) target = $region24
      $region23: #{_lambda_.1} parent=19 // pred_region
        %s175 = smul.u32 4, %s12
        %p176 = scmp.lt.s32.totalorder %s175, 7
        %s177 = scalar_select %p176, %s175, 7
        %s178 = smul.addr %s177, 8
        %s179 = scalar_lea.vmem %s0, %s178
        %s180 = smul.u32 4, %s12
      $region24: #{_lambda_.1} parent=19 // pred_fallthru
        _
      // Predicated region
      $region25: #{_lambda_.1} parent=19 // pred_check
        %p181 = pneg %p60
      $region26: #{_lambda_.1} parent=19 // pred_check_branch
        %183 = sbr.rel (%p181) target = $region28
      $region27: #{_lambda_.1} parent=19 // pred_region
        %s184 = ssub.s32 1, %s12
        %s185 = smul.u32 4, %s184
        %p186 = scmp.lt.s32.totalorder %s185, 7
        %s187 = scalar_select %p186, %s185, 7
        %s188 = smul.addr %s187, 8
        %s189 = scalar_lea.vmem %s1, %s188
        %s190 = ssub.s32 1, %s12
        %s191 = smul.u32 4, %s190
      $region28: #{_lambda_.1} parent=19 // pred_fallthru
        _
    $region20: #{_lambda_.1} parent=5 // pred_fallthru
      _
    %p192 = scmp.le.s32.totalorder 1, %s12
    %p193 = scmp.lt.s32.totalorder %s12, 3
    %p194 = pnand %p192, %p193
    %p195 = pneg %p194
    // Predicated region
    $region29: #{_lambda_.1} parent=5 // pred_check
      _
    $region30: #{_lambda_.1} parent=5 // pred_check_branch
      %197 = sbr.rel (%p194) target = $region32
    $region31: #{_lambda_.1} parent=5 // pred_region
      %s198 = ssub.s32 %s12, 1
      %s199 = smul.u32 4, %s17
      %p200 = scmp.lt.s32.totalorder %s199, 7
      %s201 = scalar_select %p200, %s199, 7
      %s202 = smul.addr %s201, 8
      %s203 = scalar_lea.vmem %s0, %s202
      %p204 = pneg %p38
      %p205 = pneg %p35
      %s206 = ssub.s32 1, %s17
      %s207 = smul.u32 4, %s206
      %p208 = scmp.lt.s32.totalorder %s207, 7
      %s209 = scalar_select %p208, %s207, 7
      %s210 = smul.addr %s209, 8
      %s211 = scalar_lea.vmem %s1, %s210
      %p212 = pneg %p66
      %p213 = pneg %p63
      %p214 = pneg %p87
      %p215 = pneg %p84
      %p216 = pneg %p108
      %p217 = pneg %p105
      %p218 = pneg %p129
      %p219 = pneg %p126
      %p220 = pneg %p150
      %p221 = pneg %p147
      %s222 = smul.u32 4, %s17
      %p223 = scmp.lt.s32.totalorder %s222, 7
      %s224 = scalar_select %p223, %s222, 7
      %s225 = smul.addr %s224, 8
      %s226 = scalar_lea.vmem %s0, %s225
      %s227 = smul.u32 4, %s17
      %s228 = ssub.s32 1, %s17
      %s229 = smul.u32 4, %s228
      %p230 = scmp.lt.s32.totalorder %s229, 7
      %s231 = scalar_select %p230, %s229, 7
      %s232 = smul.addr %s231, 8
      %s233 = scalar_lea.vmem %s1, %s232
      %s234 = ssub.s32 1, %s17
      %s235 = smul.u32 4, %s234
      %p236 = scmp.eq.s32.totalorder %s17, 0
      // Predicated region
      $region33: #{_lambda_.1} parent=31 // pred_check
        %p237 = pneg %p236
      $region34: #{_lambda_.1} parent=31 // pred_check_branch
        %239 = sbr.rel (%p237) target = $region36
      $region35: #{_lambda_.1} parent=31 // pred_region
        %vm240 = vcmask 261120
        %241 = vst.msk [vmem:[#allocation2] sm:$0xff] %vm240, 0.0
        %242 = vst.msk [vmem:[#allocation2 + $0x8] sm:$0xff] %vm240, 0.0
      $region36: #{_lambda_.1} parent=31 // pred_fallthru
        _
      %v243 = vld [vmem:[%s2] sm:$0xff]
      %v244 = vld [vmem:[%s2 + $0x8] sm:$0xff]
      %v245 = vld [vmem:[%s2 + $0x10] sm:$0xff]
      %v246 = vld [vmem:[%s2 + $0x18] sm:$0xff]
      %s247 = smul.u32 %s17, 4
      %s248 = ssub.s32 1, %s17
      %s249 = smul.u32 %s248, 4
      %v250 = vld [vmem:[#allocation2] sm:$0xff]
      %s251 = scalar_lea.vmem [#allocation2], 8
      %v252 = vld [vmem:[%s251] sm:$0xff]
      %vm253 = vcmask 261120
      %v255 = vsel %vm253, %v250, 0
      %257 = vmatprep.subr.mxu0 0.0
      %258 = vmatpush1.msra.mxu0 %v243
      %259 = vmatprep.subr.mxu0 0.0
      %260 = vmatpush1.msra.mxu0 %v244
      %261 = vmatprep.subr.mxu0 0.0
      %262 = vmatpush1.msra.mxu0 %v245
      %263 = vmatprep.subr.mxu0 0.0
      %264 = vmatpush1.msra.mxu0 %v246
      %265 = vmatprep.subr.mxu0 0.0
      %266 = vmatpush1.msra.mxu0 0.0
      %267 = vmatprep.subr.mxu0 0.0
      %268 = vmatpush1.msra.mxu0 0.0
      %269 = vmatprep.subr.mxu0 0.0
      %270 = vmatpush1.msra.mxu0 0.0
      %271 = vmatprep.subr.mxu0 0.0
      %272 = vmatpush1.msra.mxu0 0.0
      %273 = vmatprep.subr.mxu0 0.0
      %274 = vmatpush1.msra.mxu0 0.0
      %275 = vmatprep.subr.mxu0 0.0
      %276 = vmatpush1.msra.mxu0 0.0
      %277 = vmatprep.subr.mxu0 0.0
      %278 = vmatpush1.msra.mxu0 0.0
      %279 = vmatprep.subr.mxu0 0.0
      %280 = vmatpush1.msra.mxu0 0.0
      %281 = vmatprep.subr.mxu0 0.0
      %282 = vmatpush1.msra.mxu0 0.0
      %283 = vmatprep.subr.mxu0 0.0
      %284 = vmatpush1.msra.mxu0 0.0
      %285 = vmatprep.subr.mxu0 0.0
      %286 = vmatpush1.msra.mxu0 0.0
      %287 = vmatprep.subr.mxu0 0.0
      %288 = vmatpush1.msra.mxu0 0.0
      %289 = vmatprep.subr.mxu0 0.0
      %290 = vmatpush1.msra.mxu0 0.0
      %291 = vmatprep.subr.mxu0 0.0
      %292 = vmatpush1.msra.mxu0 0.0
      %293 = vmatprep.subr.mxu0 0.0
      %294 = vmatpush1.msra.mxu0 0.0
      %295 = vmatprep.subr.mxu0 0.0
      %296 = vmatpush1.msra.mxu0 0.0
      %297 = vmatprep.subr.mxu0 0.0
      %298 = vmatpush1.msra.mxu0 0.0
      %299 = vmatprep.subr.mxu0 0.0
      %300 = vmatpush1.msra.mxu0 0.0
      %301 = vmatprep.subr.mxu0 0.0
      %302 = vmatpush1.msra.mxu0 0.0
      %303 = vmatprep.subr.mxu0 0.0
      %304 = vmatpush1.msra.mxu0 0.0
      %305 = vmatprep.subr.mxu0 0.0
      %306 = vmatpush1.msra.mxu0 0.0
      %307 = vmatprep.subr.mxu0 0.0
      %308 = vmatpush1.msra.mxu0 0.0
      %309 = vmatprep.subr.mxu0 0.0
      %310 = vmatpush1.msra.mxu0 0.0
      %311 = vmatprep.subr.mxu0 0.0
      %312 = vmatpush1.msra.mxu0 0.0
      %313 = vmatprep.subr.mxu0 0.0
      %314 = vmatpush1.msra.mxu0 0.0
      %315 = vmatprep.subr.mxu0 0.0
      %316 = vmatpush1.msra.mxu0 0.0
      %317 = vmatprep.subr.mxu0 0.0
      %318 = vmatpush1.msra.mxu0 0.0
      %319 = vmatprep.subr.mxu0 0.0
      %320 = vmatpush1.msra.mxu0 0.0
      %321 = vmatprep.mubr.f32.mxu0 0.0
      %322 = vmatmul.mubr.f32.gmra.mrb[0].mxu0 %v255
      %v323 = vpop.f32.mrb[0].mxu0
      %v324 = vadd.f32 0.0, %v323
      %v325 = vpop.f32.mrb[0].mxu0
      %326 = vdwg.mxu0
      %v327 = vld [vmem:[%s226] sm:$0xff]
      %v328 = vadd.f32 %v327, %v324
      %s329 = scalar_lea.vmem %s233, 24
      %v330 = vld [vmem:[%s329] sm:$0xff]
      %332 = vrot.lane.b32.xlu0 %v324, 64
      %v333 = vpop.permute.xlu0 %332
      %v335 = vadd.f32 %v330, %v333
      %v336 = vmul.f32 %v328, 0.5
      %v337 = vtanh.pop %v336
      %v338 = vmul.f32 %v337, 0.5
      %v339 = vadd.f32 %v338, 0.5
      %v340 = vtanh.pop %v328
      %342 = vrot.lane.b32.xlu0 %v252, 16
      %v343 = vpop.permute.xlu0 %342
      %v345 = vmul.f32 %v339, %v343
      %347 = vrot.lane.b32.xlu0 %v340, 80
      %v348 = vpop.permute.xlu0 %347
      %v350 = vmul.f32 %v339, %v348
      %352 = vrot.lane.b32.xlu0 %v350, 16
      %v353 = vpop.permute.xlu0 %352
      %v355 = vadd.f32 %v345, %v353
      %v356 = vtanh.pop %v355
      %358 = vrot.lane.b32.xlu0 %v356, 16
      %v359 = vpop.permute.xlu0 %358
      %v361 = vmul.f32 %v339, %v359
      %v362 = vmul.f32 %v335, 0.5
      %v363 = vtanh.pop %v362
      %v364 = vmul.f32 %v363, 0.5
      %v365 = vadd.f32 %v364, 0.5
      %v366 = vtanh.pop %v335
      %v367 = vmul.f32 %v365, %v252
      %369 = vrot.lane.b32.xlu0 %v366, 80
      %v370 = vpop.permute.xlu0 %369
      %v372 = vmul.f32 %v365, %v370
      %374 = vrot.lane.b32.xlu0 %v372, 16
      %v375 = vpop.permute.xlu0 %374
      %v377 = vadd.f32 %v367, %v375
      %v378 = vtanh.pop %v377
      %380 = vrot.lane.b32.xlu0 %v378, 16
      %v381 = vpop.permute.xlu0 %380
      %v383 = vmul.f32 %v365, %v381
      %385 = vrot.lane.b32.xlu0 %v361, 96
      %v386 = vpop.permute.xlu0 %385
      %s388 = smul.u32 %s247, 8
      %s389 = scalar_lea.vmem %s3, %s388
      %vm390 = vcmask 130048
      %391 = vst.msk [vmem:[%s389] sm:$0xff] %vm390, %v386
      %s392 = sadd.s32 %s249, 3
      %394 = vrot.lane.b32.xlu0 %v383, 112
      %v395 = vpop.permute.xlu0 %394
      %s397 = smul.u32 %s392, 8
      %s398 = scalar_lea.vmem %s3, %s397
      %vm399 = vcmask 261248
      %400 = vst.msk [vmem:[%s398] sm:$0xff] %vm399, %v395
      %v401 = vsel %vm390, %v386, %v395
      %403 = vrot.lane.b32.xlu0 %v355, 112
      %v404 = vpop.permute.xlu0 %403
      %v406 = vsel %vm390, %v404, %v377
      %v408 = vsel %vm253, %v401, 0
      %410 = vmatprep.subr.mxu0 0.0
      %411 = vmatpush1.msra.mxu0 %v243
      %412 = vmatprep.subr.mxu0 0.0
      %413 = vmatpush1.msra.mxu0 %v244
      %414 = vmatprep.subr.mxu0 0.0
      %415 = vmatpush1.msra.mxu0 %v245
      %416 = vmatprep.subr.mxu0 0.0
      %417 = vmatpush1.msra.mxu0 %v246
      %418 = vmatprep.subr.mxu0 0.0
      %419 = vmatpush1.msra.mxu0 0.0
      %420 = vmatprep.subr.mxu0 0.0
      %421 = vmatpush1.msra.mxu0 0.0
      %422 = vmatprep.subr.mxu0 0.0
      %423 = vmatpush1.msra.mxu0 0.0
      %424 = vmatprep.subr.mxu0 0.0
      %425 = vmatpush1.msra.mxu0 0.0
      %426 = vmatprep.subr.mxu0 0.0
      %427 = vmatpush1.msra.mxu0 0.0
      %428 = vmatprep.subr.mxu0 0.0
      %429 = vmatpush1.msra.mxu0 0.0
      %430 = vmatprep.subr.mxu0 0.0
      %431 = vmatpush1.msra.mxu0 0.0
      %432 = vmatprep.subr.mxu0 0.0
      %433 = vmatpush1.msra.mxu0 0.0
      %434 = vmatprep.subr.mxu0 0.0
      %435 = vmatpush1.msra.mxu0 0.0
      %436 = vmatprep.subr.mxu0 0.0
      %437 = vmatpush1.msra.mxu0 0.0
      %438 = vmatprep.subr.mxu0 0.0
      %439 = vmatpush1.msra.mxu0 0.0
      %440 = vmatprep.subr.mxu0 0.0
      %441 = vmatpush1.msra.mxu0 0.0
      %442 = vmatprep.subr.mxu0 0.0
      %443 = vmatpush1.msra.mxu0 0.0
      %444 = vmatprep.subr.mxu0 0.0
      %445 = vmatpush1.msra.mxu0 0.0
      %446 = vmatprep.subr.mxu0 0.0
      %447 = vmatpush1.msra.mxu0 0.0
      %448 = vmatprep.subr.mxu0 0.0
      %449 = vmatpush1.msra.mxu0 0.0
      %450 = vmatprep.subr.mxu0 0.0
      %451 = vmatpush1.msra.mxu0 0.0
      %452 = vmatprep.subr.mxu0 0.0
      %453 = vmatpush1.msra.mxu0 0.0
      %454 = vmatprep.subr.mxu0 0.0
      %455 = vmatpush1.msra.mxu0 0.0
      %456 = vmatprep.subr.mxu0 0.0
      %457 = vmatpush1.msra.mxu0 0.0
      %458 = vmatprep.subr.mxu0 0.0
      %459 = vmatpush1.msra.mxu0 0.0
      %460 = vmatprep.subr.mxu0 0.0
      %461 = vmatpush1.msra.mxu0 0.0
      %462 = vmatprep.subr.mxu0 0.0
      %463 = vmatpush1.msra.mxu0 0.0
      %464 = vmatprep.subr.mxu0 0.0
      %465 = vmatpush1.msra.mxu0 0.0
      %466 = vmatprep.subr.mxu0 0.0
      %467 = vmatpush1.msra.mxu0 0.0
      %468 = vmatprep.subr.mxu0 0.0
      %469 = vmatpush1.msra.mxu0 0.0
      %470 = vmatprep.subr.mxu0 0.0
      %471 = vmatpush1.msra.mxu0 0.0
      %472 = vmatprep.subr.mxu0 0.0
      %473 = vmatpush1.msra.mxu0 0.0
      %474 = vmatprep.mubr.f32.mxu0 0.0
      %475 = vmatmul.mubr.f32.gmra.mrb[0].mxu0 %v408
      %v476 = vpop.f32.mrb[0].mxu0
      %v477 = vadd.f32 0.0, %v476
      %v478 = vpop.f32.mrb[0].mxu0
      %479 = vdwg.mxu0
      %s480 = scalar_lea.vmem %s226, 8
      %v481 = vld [vmem:[%s480] sm:$0xff]
      %v482 = vadd.f32 %v481, %v477
      %s483 = scalar_lea.vmem %s233, 16
      %v484 = vld [vmem:[%s483] sm:$0xff]
      %486 = vrot.lane.b32.xlu0 %v477, 64
      %v487 = vpop.permute.xlu0 %486
      %v489 = vadd.f32 %v484, %v487
      %v490 = vmul.f32 %v482, 0.5
      %v491 = vtanh.pop %v490
      %v492 = vmul.f32 %v491, 0.5
      %v493 = vadd.f32 %v492, 0.5
      %v494 = vtanh.pop %v482
      %496 = vrot.lane.b32.xlu0 %v406, 16
      %v497 = vpop.permute.xlu0 %496
      %v499 = vmul.f32 %v493, %v497
      %501 = vrot.lane.b32.xlu0 %v494, 80
      %v502 = vpop.permute.xlu0 %501
      %v504 = vmul.f32 %v493, %v502
      %506 = vrot.lane.b32.xlu0 %v504, 16
      %v507 = vpop.permute.xlu0 %506
      %v509 = vadd.f32 %v499, %v507
      %v510 = vtanh.pop %v509
      %512 = vrot.lane.b32.xlu0 %v510, 16
      %v513 = vpop.permute.xlu0 %512
      %v515 = vmul.f32 %v493, %v513
      %v516 = vmul.f32 %v489, 0.5
      %v517 = vtanh.pop %v516
      %v518 = vmul.f32 %v517, 0.5
      %v519 = vadd.f32 %v518, 0.5
      %v520 = vtanh.pop %v489
      %v521 = vmul.f32 %v519, %v406
      %523 = vrot.lane.b32.xlu0 %v520, 80
      %v524 = vpop.permute.xlu0 %523
      %v526 = vmul.f32 %v519, %v524
      %528 = vrot.lane.b32.xlu0 %v526, 16
      %v529 = vpop.permute.xlu0 %528
      %v531 = vadd.f32 %v521, %v529
      %v532 = vtanh.pop %v531
      %534 = vrot.lane.b32.xlu0 %v532, 16
      %v535 = vpop.permute.xlu0 %534
      %v537 = vmul.f32 %v519, %v535
      %s538 = sadd.s32 %s247, 1
      %540 = vrot.lane.b32.xlu0 %v515, 96
      %v541 = vpop.permute.xlu0 %540
      %s543 = smul.u32 %s538, 8
      %s544 = scalar_lea.vmem %s3, %s543
      %545 = vst.msk [vmem:[%s544] sm:$0xff] %vm390, %v541
      %s546 = sadd.s32 %s249, 2
      %548 = vrot.lane.b32.xlu0 %v537, 112
      %v549 = vpop.permute.xlu0 %548
      %s551 = smul.u32 %s546, 8
      %s552 = scalar_lea.vmem %s3, %s551
      %553 = vst.msk [vmem:[%s552] sm:$0xff] %vm399, %v549
      %v554 = vsel %vm390, %v541, %v549
      %556 = vrot.lane.b32.xlu0 %v509, 112
      %v557 = vpop.permute.xlu0 %556
      %v559 = vsel %vm390, %v557, %v531
      %v561 = vsel %vm253, %v554, 0
      %563 = vmatprep.subr.mxu0 0.0
      %564 = vmatpush1.msra.mxu0 %v243
      %565 = vmatprep.subr.mxu0 0.0
      %566 = vmatpush1.msra.mxu0 %v244
      %567 = vmatprep.subr.mxu0 0.0
      %568 = vmatpush1.msra.mxu0 %v245
      %569 = vmatprep.subr.mxu0 0.0
      %570 = vmatpush1.msra.mxu0 %v246
      %571 = vmatprep.subr.mxu0 0.0
      %572 = vmatpush1.msra.mxu0 0.0
      %573 = vmatprep.subr.mxu0 0.0
      %574 = vmatpush1.msra.mxu0 0.0
      %575 = vmatprep.subr.mxu0 0.0
      %576 = vmatpush1.msra.mxu0 0.0
      %577 = vmatprep.subr.mxu0 0.0
      %578 = vmatpush1.msra.mxu0 0.0
      %579 = vmatprep.subr.mxu0 0.0
      %580 = vmatpush1.msra.mxu0 0.0
      %581 = vmatprep.subr.mxu0 0.0
      %582 = vmatpush1.msra.mxu0 0.0
      %583 = vmatprep.subr.mxu0 0.0
      %584 = vmatpush1.msra.mxu0 0.0
      %585 = vmatprep.subr.mxu0 0.0
      %586 = vmatpush1.msra.mxu0 0.0
      %587 = vmatprep.subr.mxu0 0.0
      %588 = vmatpush1.msra.mxu0 0.0
      %589 = vmatprep.subr.mxu0 0.0
      %590 = vmatpush1.msra.mxu0 0.0
      %591 = vmatprep.subr.mxu0 0.0
      %592 = vmatpush1.msra.mxu0 0.0
      %593 = vmatprep.subr.mxu0 0.0
      %594 = vmatpush1.msra.mxu0 0.0
      %595 = vmatprep.subr.mxu0 0.0
      %596 = vmatpush1.msra.mxu0 0.0
      %597 = vmatprep.subr.mxu0 0.0
      %598 = vmatpush1.msra.mxu0 0.0
      %599 = vmatprep.subr.mxu0 0.0
      %600 = vmatpush1.msra.mxu0 0.0
      %601 = vmatprep.subr.mxu0 0.0
      %602 = vmatpush1.msra.mxu0 0.0
      %603 = vmatprep.subr.mxu0 0.0
      %604 = vmatpush1.msra.mxu0 0.0
      %605 = vmatprep.subr.mxu0 0.0
      %606 = vmatpush1.msra.mxu0 0.0
      %607 = vmatprep.subr.mxu0 0.0
      %608 = vmatpush1.msra.mxu0 0.0
      %609 = vmatprep.subr.mxu0 0.0
      %610 = vmatpush1.msra.mxu0 0.0
      %611 = vmatprep.subr.mxu0 0.0
      %612 = vmatpush1.msra.mxu0 0.0
      %613 = vmatprep.subr.mxu0 0.0
      %614 = vmatpush1.msra.mxu0 0.0
      %615 = vmatprep.subr.mxu0 0.0
      %616 = vmatpush1.msra.mxu0 0.0
      %617 = vmatprep.subr.mxu0 0.0
      %618 = vmatpush1.msra.mxu0 0.0
      %619 = vmatprep.subr.mxu0 0.0
      %620 = vmatpush1.msra.mxu0 0.0
      %621 = vmatprep.subr.mxu0 0.0
      %622 = vmatpush1.msra.mxu0 0.0
      %623 = vmatprep.subr.mxu0 0.0
      %624 = vmatpush1.msra.mxu0 0.0
      %625 = vmatprep.subr.mxu0 0.0
      %626 = vmatpush1.msra.mxu0 0.0
      %627 = vmatprep.mubr.f32.mxu0 0.0
      %628 = vmatmul.mubr.f32.gmra.mrb[0].mxu0 %v561
      %v629 = vpop.f32.mrb[0].mxu0
      %v630 = vadd.f32 0.0, %v629
      %v631 = vpop.f32.mrb[0].mxu0
      %632 = vdwg.mxu0
      %s633 = scalar_lea.vmem %s226, 16
      %v634 = vld [vmem:[%s633] sm:$0xff]
      %v635 = vadd.f32 %v634, %v630
      %s636 = scalar_lea.vmem %s233, 8
      %v637 = vld [vmem:[%s636] sm:$0xff]
      %639 = vrot.lane.b32.xlu0 %v630, 64
      %v640 = vpop.permute.xlu0 %639
      %v642 = vadd.f32 %v637, %v640
      %v643 = vmul.f32 %v635, 0.5
      %v644 = vtanh.pop %v643
      %v645 = vmul.f32 %v644, 0.5
      %v646 = vadd.f32 %v645, 0.5
      %v647 = vtanh.pop %v635
      %649 = vrot.lane.b32.xlu0 %v559, 16
      %v650 = vpop.permute.xlu0 %649
      %v652 = vmul.f32 %v646, %v650
      %654 = vrot.lane.b32.xlu0 %v647, 80
      %v655 = vpop.permute.xlu0 %654
      %v657 = vmul.f32 %v646, %v655
      %659 = vrot.lane.b32.xlu0 %v657, 16
      %v660 = vpop.permute.xlu0 %659
      %v662 = vadd.f32 %v652, %v660
      %v663 = vtanh.pop %v662
      %665 = vrot.lane.b32.xlu0 %v663, 16
      %v666 = vpop.permute.xlu0 %665
      %v668 = vmul.f32 %v646, %v666
      %v669 = vmul.f32 %v642, 0.5
      %v670 = vtanh.pop %v669
      %v671 = vmul.f32 %v670, 0.5
      %v672 = vadd.f32 %v671, 0.5
      %v673 = vtanh.pop %v642
      %v674 = vmul.f32 %v672, %v559
      %676 = vrot.lane.b32.xlu0 %v673, 80
      %v677 = vpop.permute.xlu0 %676
      %v679 = vmul.f32 %v672, %v677
      %681 = vrot.lane.b32.xlu0 %v679, 16
      %v682 = vpop.permute.xlu0 %681
      %v684 = vadd.f32 %v674, %v682
      %v685 = vtanh.pop %v684
      %687 = vrot.lane.b32.xlu0 %v685, 16
      %v688 = vpop.permute.xlu0 %687
      %v690 = vmul.f32 %v672, %v688
      %s691 = sadd.s32 %s247, 2
      %693 = vrot.lane.b32.xlu0 %v668, 96
      %v694 = vpop.permute.xlu0 %693
      %s696 = smul.u32 %s691, 8
      %s697 = scalar_lea.vmem %s3, %s696
      %698 = vst.msk [vmem:[%s697] sm:$0xff] %vm390, %v694
      %s699 = sadd.s32 %s249, 1
      %701 = vrot.lane.b32.xlu0 %v690, 112
      %v702 = vpop.permute.xlu0 %701
      %s704 = smul.u32 %s699, 8
      %s705 = scalar_lea.vmem %s3, %s704
      %706 = vst.msk [vmem:[%s705] sm:$0xff] %vm399, %v702
      %v707 = vsel %vm390, %v694, %v702
      %709 = vrot.lane.b32.xlu0 %v662, 112
      %v710 = vpop.permute.xlu0 %709
      %v712 = vsel %vm390, %v710, %v684
      %v714 = vsel %vm253, %v707, 0
      %716 = vmatprep.subr.mxu0 0.0
      %717 = vmatpush1.msra.mxu0 %v243
      %718 = vmatprep.subr.mxu0 0.0
      %719 = vmatpush1.msra.mxu0 %v244
      %720 = vmatprep.subr.mxu0 0.0
      %721 = vmatpush1.msra.mxu0 %v245
      %722 = vmatprep.subr.mxu0 0.0
      %723 = vmatpush1.msra.mxu0 %v246
      %724 = vmatprep.subr.mxu0 0.0
      %725 = vmatpush1.msra.mxu0 0.0
      %726 = vmatprep.subr.mxu0 0.0
      %727 = vmatpush1.msra.mxu0 0.0
      %728 = vmatprep.subr.mxu0 0.0
      %729 = vmatpush1.msra.mxu0 0.0
      %730 = vmatprep.subr.mxu0 0.0
      %731 = vmatpush1.msra.mxu0 0.0
      %732 = vmatprep.subr.mxu0 0.0
      %733 = vmatpush1.msra.mxu0 0.0
      %734 = vmatprep.subr.mxu0 0.0
      %735 = vmatpush1.msra.mxu0 0.0
      %736 = vmatprep.subr.mxu0 0.0
      %737 = vmatpush1.msra.mxu0 0.0
      %738 = vmatprep.subr.mxu0 0.0
      %739 = vmatpush1.msra.mxu0 0.0
      %740 = vmatprep.subr.mxu0 0.0
      %741 = vmatpush1.msra.mxu0 0.0
      %742 = vmatprep.subr.mxu0 0.0
      %743 = vmatpush1.msra.mxu0 0.0
      %744 = vmatprep.subr.mxu0 0.0
      %745 = vmatpush1.msra.mxu0 0.0
      %746 = vmatprep.subr.mxu0 0.0
      %747 = vmatpush1.msra.mxu0 0.0
      %748 = vmatprep.subr.mxu0 0.0
      %749 = vmatpush1.msra.mxu0 0.0
      %750 = vmatprep.subr.mxu0 0.0
      %751 = vmatpush1.msra.mxu0 0.0
      %752 = vmatprep.subr.mxu0 0.0
      %753 = vmatpush1.msra.mxu0 0.0
      %754 = vmatprep.subr.mxu0 0.0
      %755 = vmatpush1.msra.mxu0 0.0
      %756 = vmatprep.subr.mxu0 0.0
      %757 = vmatpush1.msra.mxu0 0.0
      %758 = vmatprep.subr.mxu0 0.0
      %759 = vmatpush1.msra.mxu0 0.0
      %760 = vmatprep.subr.mxu0 0.0
      %761 = vmatpush1.msra.mxu0 0.0
      %762 = vmatprep.subr.mxu0 0.0
      %763 = vmatpush1.msra.mxu0 0.0
      %764 = vmatprep.subr.mxu0 0.0
      %765 = vmatpush1.msra.mxu0 0.0
      %766 = vmatprep.subr.mxu0 0.0
      %767 = vmatpush1.msra.mxu0 0.0
      %768 = vmatprep.subr.mxu0 0.0
      %769 = vmatpush1.msra.mxu0 0.0
      %770 = vmatprep.subr.mxu0 0.0
      %771 = vmatpush1.msra.mxu0 0.0
      %772 = vmatprep.subr.mxu0 0.0
      %773 = vmatpush1.msra.mxu0 0.0
      %774 = vmatprep.subr.mxu0 0.0
      %775 = vmatpush1.msra.mxu0 0.0
      %776 = vmatprep.subr.mxu0 0.0
      %777 = vmatpush1.msra.mxu0 0.0
      %778 = vmatprep.subr.mxu0 0.0
      %779 = vmatpush1.msra.mxu0 0.0
      %780 = vmatprep.mubr.f32.mxu0 0.0
      %781 = vmatmul.mubr.f32.gmra.mrb[0].mxu0 %v714
      %v782 = vpop.f32.mrb[0].mxu0
      %v783 = vadd.f32 0.0, %v782
      %v784 = vpop.f32.mrb[0].mxu0
      %785 = vdwg.mxu0
      %s786 = scalar_lea.vmem %s226, 24
      %v787 = vld [vmem:[%s786] sm:$0xff]
      %v788 = vadd.f32 %v787, %v783
      %v789 = vld [vmem:[%s233] sm:$0xff]
      %791 = vrot.lane.b32.xlu0 %v783, 64
      %v792 = vpop.permute.xlu0 %791
      %v794 = vadd.f32 %v789, %v792
      %v795 = vmul.f32 %v788, 0.5
      %v796 = vtanh.pop %v795
      %v797 = vmul.f32 %v796, 0.5
      %v798 = vadd.f32 %v797, 0.5
      %v799 = vtanh.pop %v788
      %801 = vrot.lane.b32.xlu0 %v712, 16
      %v802 = vpop.permute.xlu0 %801
      %v804 = vmul.f32 %v798, %v802
      %806 = vrot.lane.b32.xlu0 %v799, 80
      %v807 = vpop.permute.xlu0 %806
      %v809 = vmul.f32 %v798, %v807
      %811 = vrot.lane.b32.xlu0 %v809, 16
      %v812 = vpop.permute.xlu0 %811
      %v814 = vadd.f32 %v804, %v812
      %v815 = vtanh.pop %v814
      %817 = vrot.lane.b32.xlu0 %v815, 16
      %v818 = vpop.permute.xlu0 %817
      %v820 = vmul.f32 %v798, %v818
      %v821 = vmul.f32 %v794, 0.5
      %v822 = vtanh.pop %v821
      %v823 = vmul.f32 %v822, 0.5
      %v824 = vadd.f32 %v823, 0.5
      %v825 = vtanh.pop %v794
      %v826 = vmul.f32 %v824, %v712
      %828 = vrot.lane.b32.xlu0 %v825, 80
      %v829 = vpop.permute.xlu0 %828
      %v831 = vmul.f32 %v824, %v829
      %833 = vrot.lane.b32.xlu0 %v831, 16
      %v834 = vpop.permute.xlu0 %833
      %v836 = vadd.f32 %v826, %v834
      %v837 = vtanh.pop %v836
      %839 = vrot.lane.b32.xlu0 %v837, 16
      %v840 = vpop.permute.xlu0 %839
      %v842 = vmul.f32 %v824, %v840
      %s843 = sadd.s32 %s247, 3
      %845 = vrot.lane.b32.xlu0 %v820, 96
      %v846 = vpop.permute.xlu0 %845
      %s848 = smul.u32 %s843, 8
      %s849 = scalar_lea.vmem %s3, %s848
      %850 = vst.msk [vmem:[%s849] sm:$0xff] %vm390, %v846
      %852 = vrot.lane.b32.xlu0 %v842, 112
      %v853 = vpop.permute.xlu0 %852
      %s855 = smul.u32 %s249, 8
      %s856 = scalar_lea.vmem %s3, %s855
      %857 = vst.msk [vmem:[%s856] sm:$0xff] %vm399, %v853
      %v858 = vsel %vm390, %v846, %v853
      %860 = vrot.lane.b32.xlu0 %v814, 112
      %v861 = vpop.permute.xlu0 %860
      %v863 = vsel %vm390, %v861, %v836
      %864 = vst.msk [vmem:[#allocation2] sm:$0xff] %vm253, %v858
      %865 = vst.msk [vmem:[%s251] sm:$0xff] %vm253, %v863
      %p866 = scmp.eq.s32.totalorder %s17, 1
      // Predicated region
      $region37: #{_lambda_.1} parent=31 // pred_check
        %p867 = pneg %p866
      $region38: #{_lambda_.1} parent=31 // pred_check_branch
        %869 = sbr.rel (%p867) target = $region40
      $region39: #{_lambda_.1} parent=31 // pred_region
        %870 = vst.msk [vmem:[%s4] sm:$0xff] %vm390, %v858
        %872 = vrot.lane.b32.xlu0 %v858, 112
        %v873 = vpop.permute.xlu0 %872
        %s875 = scalar_lea.vmem %s4, 8
        %876 = vst.msk [vmem:[%s875] sm:$0xff] %vm390, %v873
        %877 = vst.msk [vmem:[%s5] sm:$0xff] %vm390, %v863
        %879 = vrot.lane.b32.xlu0 %v863, 112
        %v880 = vpop.permute.xlu0 %879
        %s882 = scalar_lea.vmem %s5, 8
        %883 = vst.msk [vmem:[%s882] sm:$0xff] %vm390, %v880
      $region40: #{_lambda_.1} parent=31 // pred_fallthru
        _
      // Predicated region
      $region41: #{_lambda_.1} parent=31 // pred_check
        %p884 = pneg %p105
      $region42: #{_lambda_.1} parent=31 // pred_check_branch
        %886 = sbr.rel (%p884) target = $region44
      $region43: #{_lambda_.1} parent=31 // pred_region
        _
      $region44: #{_lambda_.1} parent=31 // pred_fallthru
        _
      // Predicated region
      $region45: #{_lambda_.1} parent=31 // pred_check
        %p887 = pneg %p126
      $region46: #{_lambda_.1} parent=31 // pred_check_branch
        %889 = sbr.rel (%p887) target = $region48
      $region47: #{_lambda_.1} parent=31 // pred_region
        _
      $region48: #{_lambda_.1} parent=31 // pred_fallthru
        _
      // Predicated region
      $region49: #{_lambda_.1} parent=31 // pred_check
        %p890 = pneg %p147
      $region50: #{_lambda_.1} parent=31 // pred_check_branch
        %892 = sbr.rel (%p890) target = $region52
      $region51: #{_lambda_.1} parent=31 // pred_region
        _
      $region52: #{_lambda_.1} parent=31 // pred_fallthru
        _
      // Predicated region
      $region53: #{_lambda_.1} parent=31 // pred_check
        %p893 = pneg %p105
      $region54: #{_lambda_.1} parent=31 // pred_check_branch
        %895 = sbr.rel (%p893) target = $region56
      $region55: #{_lambda_.1} parent=31 // pred_region
        _
      $region56: #{_lambda_.1} parent=31 // pred_fallthru
        _
      // Predicated region
      $region57: #{_lambda_.1} parent=31 // pred_check
        %p896 = pneg %p126
      $region58: #{_lambda_.1} parent=31 // pred_check_branch
        %898 = sbr.rel (%p896) target = $region60
      $region59: #{_lambda_.1} parent=31 // pred_region
        _
      $region60: #{_lambda_.1} parent=31 // pred_fallthru
        _
      // Predicated region
      $region61: #{_lambda_.1} parent=31 // pred_check
        %p899 = pneg %p147
      $region62: #{_lambda_.1} parent=31 // pred_check_branch
        %901 = sbr.rel (%p899) target = $region64
      $region63: #{_lambda_.1} parent=31 // pred_region
        _
      $region64: #{_lambda_.1} parent=31 // pred_fallthru
        _
    $region32: #{_lambda_.1} parent=5 // pred_fallthru
      _
    %p902 = scmp.le.s32.totalorder 2, %s12
    // Predicated region
    $region65: #{_lambda_.1} parent=5 // pred_check
      %p903 = pneg %p902
    $region66: #{_lambda_.1} parent=5 // pred_check_branch
      %905 = sbr.rel (%p903) target = $region68
    $region67: #{_lambda_.1} parent=5 // pred_region
      %s906 = ssub.s32 %s12, 2
    $region68: #{_lambda_.1} parent=5 // pred_fallthru
      _
  $region6: #{_lambda_.1} parent=0 // loop_footer
    %s16 = sadd.s32 1, %s12
  $region7: #{_lambda_.1} parent=0 // loop_footer_branch
    %11 = sbr.rel target = $region3
  $region8: #{_lambda_.1} parent=0 // loop_exit
    _

</llo_original>
